<compile_context>
chip_gen: v6e
topology: v6e:2x2x1
jax: 0.10.0
libtpu: 0.0.40
codegen_flags: <defaults>
</compile_context>

<pallas_src>
import functools
import numpy as np
import jax
import jax.numpy as jnp
from jax import lax
from jax.experimental import pallas as pl
from jax.experimental.pallas import tpu as pltpu


# ---------------------------------------------------------------------------
# Fused kernel: one batch element per grid step
# ---------------------------------------------------------------------------
def _fused_rescnn_kernel(*refs, nblocks, K, pad, S):
    f32, bf16 = jnp.float32, jnp.bfloat16

    # ---- unpack refs ------------------------------------------------------
    idx = 0
    x_ref = refs[idx]; idx += 1
    blocks = []
    for _ in range(nblocks):
        blocks.append(tuple(refs[idx:idx + 6]))   # (w1, b1, w2, b2, ws, bs)
        idx += 6
    u_ref, fwT_ref, fb_ref = refs[idx:idx + 3]; idx += 3
    logits_ref, alpha_ref, m_ref = refs[idx:idx + 3]

    def conv_same(act_f32, w_ref):
        # 'same' 1D conv as K accumulated MXU matmuls.  Each tap is realized
        # with pltpu.roll along the sublane (S) axis plus boundary masking
        # instead of a padded VMEM scratch / lane concat.
        _, cin = act_f32.shape
        acc = None
        for k in range(K):
            d = k - pad
            if d == 0:
                tap = act_f32
            else:
                rolled = pltpu.roll(act_f32, shift=(-d) % S, axis=0)
                row = lax.broadcasted_iota(jnp.int32, (S, cin), 0)
                valid = (row >= max(0, -d)) & (row < S - max(0, d))
                tap = jnp.where(valid, rolled, 0.0)
            part = jnp.dot(tap.astype(bf16), w_ref[k],
                           preferred_element_type=f32)
            acc = part if acc is None else acc + part
        return acc

    # ---- residual block stack (activations live in VMEM/vregs only) -------
    cur = x_ref[0].astype(f32)                               # [S, E] f32
    for (w1_ref, b1_ref, w2_ref, b2_ref, ws_ref, bs_ref) in blocks:
        # conv1 (BN1 scale folded into w1) + shift + tanh
        h = jnp.tanh(conv_same(cur, w1_ref) + b1_ref[...])   # [S, cout]
        # conv2 (BN2 folded); the last block's output lanes are padded to C_pad
        g = conv_same(h, w2_ref) + b2_ref[...]               # [S, cout_n]
        # 1x1 shortcut conv (BNs folded)
        sc = jnp.dot(cur.astype(bf16), ws_ref[...],
                     preferred_element_type=f32) + bs_ref[...]
        # Dropout is an eval-mode identity
        cur = jnp.tanh(g + sc)                               # [S, cout_n] f32

    # ---- OutputLayer: label-wise attention (M = S on the MXU) -------------
    att = jnp.dot(cur.astype(bf16), u_ref[...],
                  preferred_element_type=f32)                # [S, Y_pad]
    att = att - jnp.max(att, axis=0, keepdims=True)
    e = jnp.exp(att)
    alpha = e / jnp.sum(e, axis=0, keepdims=True)            # softmax over S
    alpha_ref[0] = alpha                                     # [S, Y_pad] f32

    # m[y, c] = sum_s alpha[s, y] * x[s, c]    (f32 MXU, lane-dense output)
    m = lax.dot_general(alpha, cur, (((0,), (0,)), ((), ())),
                        preferred_element_type=f32)          # [Y_pad, C_pad]
    m_ref[0] = m

    # logits[y] = sum_c final_w[y, c] * m[y, c] + b[y]
    #           = sum_s alpha[s, y] * (x @ final_w^T)[s, y] + b[y]
    # (second form lands directly in a lane-dense [1, Y_pad] row)
    p = jnp.dot(cur, fwT_ref[...], preferred_element_type=f32)  # [S, Y_pad]
    logits_ref[0] = jnp.sum(alpha * p, axis=0, keepdims=True) + fb_ref[...]


# ---------------------------------------------------------------------------
# Full ResCNN forward
# ---------------------------------------------------------------------------
def res_cnn_forward(params, token_ids, target):
    # WordRep: embedding lookup (glue) + Dropout (eval -> identity).  The
    # PyTorch NCW transposes around the conv stack are pure layout; the kernel
    # is channels-last so no data movement is needed.
    x = jnp.take(params["embed"], token_ids, axis=0).astype(jnp.bfloat16)
    B, S, E = x.shape

    blocks = params["blocks"]
    nblocks = len(blocks)
    K = int(blocks[0]["w1"].shape[0])
    # TODO(synk): 'same' padding pad=K//2 only matches PyTorch Conv1d for odd K.
    assert K % 2 == 1
    pad = K // 2
    dims_raw = [(int(b["w1"].shape[1]), int(b["w1"].shape[2])) for b in blocks]
    C = dims_raw[-1][1]
    Y = int(params["U_w"].shape[0])
    LANE = 128
    C_pad = ((C + LANE - 1) // LANE) * LANE
    Y_pad = ((Y + LANE - 1) // LANE) * LANE

    flat_inputs = [x]
    in_specs = [pl.BlockSpec((1, S, E), lambda b: (b, 0, 0))]

    for bi, blk in enumerate(blocks):
        cin, cout = dims_raw[bi]
        last = bi == nblocks - 1
        cout_n = C_pad if last else cout
        s1, sh1 = blk["bn1"][0], blk["bn1"][1]
        s2, sh2 = blk["bn2"][0], blk["bn2"][1]
        ss, shs = blk["bns"][0], blk["bns"][1]
        # Fold the BN scales into the conv weights (bias=False convs), keep
        # only the per-channel shifts as runtime adds.
        w1f = (blk["w1"] * s1[None, None, :]).astype(jnp.bfloat16)
        b1 = sh1.reshape(1, cout)
        w2f = blk["w2"] * s2[None, None, :]
        wsf = blk["ws"] * ss[None, :]
        b2 = sh2.reshape(1, cout)
        bs = shs.reshape(1, cout)
        if last and cout_n != cout:
            extra = cout_n - cout
            w2f = jnp.pad(w2f, ((0, 0), (0, 0), (0, extra)))
            wsf = jnp.pad(wsf, ((0, 0), (0, extra)))
            b2 = jnp.pad(b2, ((0, 0), (0, extra)))
            bs = jnp.pad(bs, ((0, 0), (0, extra)))
        w2f = w2f.astype(jnp.bfloat16)
        wsf = wsf.astype(jnp.bfloat16)

        flat_inputs += [w1f, b1, w2f, b2, wsf, bs]
        in_specs += [
            pl.BlockSpec((K, cin, cout), lambda b: (0, 0, 0)),
            pl.BlockSpec((1, cout), lambda b: (0, 0)),
            pl.BlockSpec((K, cout, cout_n), lambda b: (0, 0, 0)),
            pl.BlockSpec((1, cout_n), lambda b: (0, 0)),
            pl.BlockSpec((cin, cout_n), lambda b: (0, 0)),
            pl.BlockSpec((1, cout_n), lambda b: (0, 0)),
        ]

    # Attention weights, pre-transposed and zero-padded so every kernel
    # output is a full 128-lane slab.
    U_pad = jnp.zeros((C_pad, Y_pad), jnp.float32)
    U_pad = U_pad.at[:C, :Y].set(params["U_w"].T).astype(jnp.bfloat16)
    fwT_pad = jnp.zeros((C_pad, Y_pad), jnp.float32)
    fwT_pad = fwT_pad.at[:C, :Y].set(params["final_w"].T)
    fb_pad = jnp.zeros((1, Y_pad), jnp.float32).at[0, :Y].set(params["final_b"])
    flat_inputs += [U_pad, fwT_pad, fb_pad]
    in_specs += [
        pl.BlockSpec((C_pad, Y_pad), lambda b: (0, 0)),
        pl.BlockSpec((C_pad, Y_pad), lambda b: (0, 0)),
        pl.BlockSpec((1, Y_pad), lambda b: (0, 0)),
    ]

    kernel = functools.partial(_fused_rescnn_kernel,
                               nblocks=nblocks, K=K, pad=pad, S=S)

    logits_p, alpha_p, m_p = pl.pallas_call(
        kernel,
        out_shape=(
            jax.ShapeDtypeStruct((B, 1, Y_pad), jnp.float32),
            jax.ShapeDtypeStruct((B, S, Y_pad), jnp.float32),
            jax.ShapeDtypeStruct((B, Y_pad, C_pad), jnp.float32),
        ),
        grid_spec=pltpu.PrefetchScalarGridSpec(
            num_scalar_prefetch=0,
            grid=(B,),
            in_specs=in_specs,
            out_specs=[
                pl.BlockSpec((1, 1, Y_pad), lambda b: (b, 0, 0)),
                pl.BlockSpec((1, S, Y_pad), lambda b: (b, 0, 0)),
                pl.BlockSpec((1, Y_pad, C_pad), lambda b: (b, 0, 0)),
            ],
        ),
        compiler_params=pltpu.CompilerParams(
            dimension_semantics=("parallel",),
            vmem_limit_bytes=48 * 1024 * 1024),
    )(*flat_inputs)

    logits = logits_p[:, 0, :Y]
    alpha = jnp.swapaxes(alpha_p[:, :, :Y], 1, 2)     # [B, Y, S]
    m = m_p[:, :Y, :C]                                # [B, Y, C]

    # BCEWithLogitsLoss(reduction='mean') from logits (wrapper-side glue).
    # TODO(synk): args.label_smoothing branch of OutputLayer is not implemented.
    z, t = logits, target
    loss = jnp.mean(jnp.maximum(z, 0.0) - z * t + jnp.log1p(jnp.exp(-jnp.abs(z))))
    # TODO(synk): reference OutputLayer.forward returns only (logits, loss) but
    # ResCNN.forward unpacks 4 values; we expose (alpha, m) as (alpha, feat).
    return logits, loss, alpha, m


# ---------------------------------------------------------------------------
# Deterministic parameter init + pure-JAX f32 reference for a sanity check
# ---------------------------------------------------------------------------
def init_params(key, vocab, channels, Y, K):
    keys = jax.random.split(key, 16)
    eps = 1e-5
    embed = jax.random.normal(keys[0], (vocab, channels[0]), jnp.float32) * 0.1
    embed = embed.at[0].set(0.0)          # padding_idx=0
    blocks = []
    ki = 1
    for i in range(len(channels) - 1):
        cin, cout = channels[i], channels[i + 1]
        w1 = jax.random.normal(keys[ki], (K, cin, cout), jnp.float32) * 0.05; ki += 1
        w2 = jax.random.normal(keys[ki], (K, cout, cout), jnp.float32) * 0.05; ki += 1
        ws = jax.random.normal(keys[ki], (cin, cout), jnp.float32) * 0.05; ki += 1
        # eval-mode BN with PyTorch defaults: gamma=1, beta=0, mean=0, var=1
        scale = jnp.full((cout,), 1.0 / np.sqrt(1.0 + eps), jnp.float32)
        shift = jnp.zeros((cout,), jnp.float32)
        bn = jnp.stack([scale, shift])    # (2, cout)
        blocks.append(dict(w1=w1, w2=w2, ws=ws, bn1=bn, bn2=bn, bns=bn))
    C = channels[-1]
    bound = np.sqrt(6.0 / (C + Y))        # xavier_uniform_
    U_w = jax.random.uniform(keys[ki], (Y, C), jnp.float32, -bound, bound); ki += 1
    final_w = jax.random.uniform(keys[ki], (Y, C), jnp.float32, -bound, bound); ki += 1
    bb = 1.0 / np.sqrt(C)
    final_b = jax.random.uniform(keys[ki], (Y,), jnp.float32, -bb, bb); ki += 1
    return dict(embed=embed, blocks=blocks, U_w=U_w,
                final_w=final_w, final_b=final_b)


def reference_forward(params, token_ids, target, K):
    pad = K // 2
    x = jnp.take(params["embed"], token_ids, axis=0)

    def conv1d(inp, w):
        B, S, _ = inp.shape
        ip = jnp.pad(inp, ((0, 0), (pad, pad), (0, 0)))
        out = jnp.zeros((B, S, w.shape[2]), jnp.float32)
        for k in range(K):
            out = out + jnp.einsum('bsc,cd->bsd', ip[:, k:k + S, :], w[k])
        return out

    for blk in params["blocks"]:
        h = jnp.tanh(conv1d(x, blk["w1"]) * blk["bn1"][0] + blk["bn1"][1])
        g = conv1d(h, blk["w2"]) * blk["bn2"][0] + blk["bn2"][1]
        sc = jnp.einsum('bsc,cd->bsd', x, blk["ws"]) * blk["bns"][0] + blk["bns"][1]
        x = jnp.tanh(g + sc)

    att = jnp.einsum('yc,bsc->bys', params["U_w"], x)
    alpha = jax.nn.softmax(att, axis=2)
    m = jnp.einsum('bys,bsc->byc', alpha, x)
    logits = jnp.sum(params["final_w"] * m, axis=2) + params["final_b"]
    z, t = logits, target
    bce = jnp.maximum(z, 0.0) - z * t + jnp.log1p(jnp.exp(-jnp.abs(z)))
    return logits, jnp.mean(bce), alpha, m


if __name__ == "__main__":
    B, S, vocab = 2, 16, 50
    E, MID, NFM, Y, K = 32, 48, 32, 8, 3     # conv_layer=2: [E, MID, NFM]
    channels = [E, MID, NFM]

    key = jax.random.PRNGKey(0)
    kp, kx, kt = jax.random.split(key, 3)
    params = init_params(kp, vocab, channels, Y, K)
    token_ids = jax.random.randint(kx, (B, S), 0, vocab)
    target = jax.random.bernoulli(kt, 0.3, (B, Y)).astype(jnp.float32)

    logits, loss, alpha, feat = res_cnn_forward(params, token_ids, target)
    jax.block_until_ready((logits, loss, alpha, feat))

    rl, rloss, ralpha, rm = reference_forward(params, token_ids, target, K)
    # bf16 MXU inputs vs. a full-f32 reference -> slightly relaxed tolerance
    np.testing.assert_allclose(np.asarray(logits), np.asarray(rl),
                               rtol=2e-2, atol=2e-2)
    np.testing.assert_allclose(np.asarray(loss), np.asarray(rloss),
                               rtol=2e-2, atol=2e-2)
    np.testing.assert_allclose(np.asarray(alpha), np.asarray(ralpha),
                               rtol=2e-2, atol=2e-2)
    np.testing.assert_allclose(np.asarray(feat), np.asarray(rm),
                               rtol=2e-2, atol=2e-2)

    print("KERNEL_OK")
</pallas_src>

<mosaic_0001>
module attributes {stable_mosaic.version = 11 : i64} {
  func.func @_fused_rescnn_kernel(%arg0: i32, %arg1: memref<1x16x32xbf16, #tpu.memory_space<vmem>>, %arg2: memref<3x32x48xbf16, #tpu.memory_space<vmem>>, %arg3: memref<1x48xf32, #tpu.memory_space<vmem>>, %arg4: memref<3x48x48xbf16, #tpu.memory_space<vmem>>, %arg5: memref<1x48xf32, #tpu.memory_space<vmem>>, %arg6: memref<32x48xbf16, #tpu.memory_space<vmem>>, %arg7: memref<1x48xf32, #tpu.memory_space<vmem>>, %arg8: memref<3x48x32xbf16, #tpu.memory_space<vmem>>, %arg9: memref<1x32xf32, #tpu.memory_space<vmem>>, %arg10: memref<3x32x128xbf16, #tpu.memory_space<vmem>>, %arg11: memref<1x128xf32, #tpu.memory_space<vmem>>, %arg12: memref<48x128xbf16, #tpu.memory_space<vmem>>, %arg13: memref<1x128xf32, #tpu.memory_space<vmem>>, %arg14: memref<128x128xbf16, #tpu.memory_space<vmem>>, %arg15: memref<128x128xf32, #tpu.memory_space<vmem>>, %arg16: memref<1x128xf32, #tpu.memory_space<vmem>>, %arg17: memref<1x1x128xf32, #tpu.memory_space<vmem>>, %arg18: memref<1x16x128xf32, #tpu.memory_space<vmem>>, %arg19: memref<1x128x128xf32, #tpu.memory_space<vmem>>) attributes {dimension_semantics = [#tpu.dimension_semantics<parallel>], iteration_bounds = array<i64: 2>, scalar_prefetch = 0 : i64, scratch_operands = 0 : i64, tpu.core_type = #tpu.core_type<tc>, window_params = [{transform_indices = @transform_0, window_bounds = array<i64: 1, 16, 32>}, {pipeline_mode = #tpu.pipeline_mode<synchronous>, transform_indices = @transform_1, window_bounds = array<i64: 3, 32, 48>}, {pipeline_mode = #tpu.pipeline_mode<synchronous>, transform_indices = @transform_2, window_bounds = array<i64: 1, 48>}, {pipeline_mode = #tpu.pipeline_mode<synchronous>, transform_indices = @transform_3, window_bounds = array<i64: 3, 48, 48>}, {pipeline_mode = #tpu.pipeline_mode<synchronous>, transform_indices = @transform_4, window_bounds = array<i64: 1, 48>}, {pipeline_mode = #tpu.pipeline_mode<synchronous>, transform_indices = @transform_5, window_bounds = array<i64: 32, 48>}, {pipeline_mode = #tpu.pipeline_mode<synchronous>, transform_indices = @transform_6, window_bounds = array<i64: 1, 48>}, {pipeline_mode = #tpu.pipeline_mode<synchronous>, transform_indices = @transform_7, window_bounds = array<i64: 3, 48, 32>}, {pipeline_mode = #tpu.pipeline_mode<synchronous>, transform_indices = @transform_8, window_bounds = array<i64: 1, 32>}, {pipeline_mode = #tpu.pipeline_mode<synchronous>, transform_indices = @transform_9, window_bounds = array<i64: 3, 32, 128>}, {pipeline_mode = #tpu.pipeline_mode<synchronous>, transform_indices = @transform_10, window_bounds = array<i64: 1, 128>}, {pipeline_mode = #tpu.pipeline_mode<synchronous>, transform_indices = @transform_11, window_bounds = array<i64: 48, 128>}, {pipeline_mode = #tpu.pipeline_mode<synchronous>, transform_indices = @transform_12, window_bounds = array<i64: 1, 128>}, {pipeline_mode = #tpu.pipeline_mode<synchronous>, transform_indices = @transform_13, window_bounds = array<i64: 128, 128>}, {pipeline_mode = #tpu.pipeline_mode<synchronous>, transform_indices = @transform_14, window_bounds = array<i64: 128, 128>}, {pipeline_mode = #tpu.pipeline_mode<synchronous>, transform_indices = @transform_15, window_bounds = array<i64: 1, 128>}, {transform_indices = @transform_16, window_bounds = array<i64: 1, 1, 128>}, {transform_indices = @transform_17, window_bounds = array<i64: 1, 16, 128>}, {transform_indices = @transform_18, window_bounds = array<i64: 1, 128, 128>}]} {
    %c0 = arith.constant 0 : index
    %c0_0 = arith.constant 0 : index
    %c0_1 = arith.constant 0 : index
    %0 = vector.load %arg1[%c0, %c0_0, %c0_1] : memref<1x16x32xbf16, #tpu.memory_space<vmem>>, vector<1x16x32xbf16>
    %1 = vector.shape_cast %0 : vector<1x16x32xbf16> to vector<16x32xbf16>
    %2 = arith.extf %1 : vector<16x32xbf16> to vector<16x32xf32>
    %c1_i32 = arith.constant 1 : i32
    %3 = tpu.dynamic_rotate %2 by %c1_i32 dim 0 : vector<16x32xf32>, i32 -> vector<16x32xf32>
    %4 = tpu.iota {dimensions = array<i32: 0>} : vector<16x32xi32>
    %c1_i32_2 = arith.constant 1 : i32
    %5 = vector.broadcast %c1_i32_2 : i32 to vector<16x32xi32>
    %6 = arith.cmpi sge, %4, %5 : vector<16x32xi32>
    %c16_i32 = arith.constant 16 : i32
    %7 = vector.broadcast %c16_i32 : i32 to vector<16x32xi32>
    %8 = arith.cmpi slt, %4, %7 : vector<16x32xi32>
    %9 = arith.andi %6, %8 : vector<16x32xi1>
    %cst = arith.constant 0.000000e+00 : f32
    %10 = vector.broadcast %cst : f32 to vector<16x32xf32>
    %11 = arith.select %9, %3, %10 : vector<16x32xi1>, vector<16x32xf32>
    %12 = arith.truncf %11 : vector<16x32xf32> to vector<16x32xbf16>
    %c0_3 = arith.constant 0 : index
    %c0_4 = arith.constant 0 : index
    %c0_5 = arith.constant 0 : index
    %13 = vector.load %arg2[%c0_3, %c0_4, %c0_5] : memref<3x32x48xbf16, #tpu.memory_space<vmem>>, vector<1x32x48xbf16>
    %14 = vector.shape_cast %13 : vector<1x32x48xbf16> to vector<32x48xbf16>
    %cst_6 = arith.constant dense<0.000000e+00> : vector<16x48xf32>
    %15 = tpu.matmul %12, %14, %cst_6 {dimension_numbers = #tpu.dot_dimension_numbers<[1], [0], [0], [1], [0, 0, 1, 1], [], []>} : vector<16x32xbf16>, vector<32x48xbf16>, vector<16x48xf32> -> vector<16x48xf32>
    %16 = arith.truncf %2 : vector<16x32xf32> to vector<16x32xbf16>
    %c1 = arith.constant 1 : index
    %c0_7 = arith.constant 0 : index
    %c0_8 = arith.constant 0 : index
    %17 = vector.load %arg2[%c1, %c0_7, %c0_8] : memref<3x32x48xbf16, #tpu.memory_space<vmem>>, vector<1x32x48xbf16>
    %18 = vector.shape_cast %17 : vector<1x32x48xbf16> to vector<32x48xbf16>
    %cst_9 = arith.constant dense<0.000000e+00> : vector<16x48xf32>
    %19 = tpu.matmul %16, %18, %cst_9 {dimension_numbers = #tpu.dot_dimension_numbers<[1], [0], [0], [1], [0, 0, 1, 1], [], []>} : vector<16x32xbf16>, vector<32x48xbf16>, vector<16x48xf32> -> vector<16x48xf32>
    %20 = arith.addf %15, %19 : vector<16x48xf32>
    %c15_i32 = arith.constant 15 : i32
    %21 = tpu.dynamic_rotate %2 by %c15_i32 dim 0 : vector<16x32xf32>, i32 -> vector<16x32xf32>
    %22 = tpu.iota {dimensions = array<i32: 0>} : vector<16x32xi32>
    %c0_i32 = arith.constant 0 : i32
    %23 = vector.broadcast %c0_i32 : i32 to vector<16x32xi32>
    %24 = arith.cmpi sge, %22, %23 : vector<16x32xi32>
    %c15_i32_10 = arith.constant 15 : i32
    %25 = vector.broadcast %c15_i32_10 : i32 to vector<16x32xi32>
    %26 = arith.cmpi slt, %22, %25 : vector<16x32xi32>
    %27 = arith.andi %24, %26 : vector<16x32xi1>
    %cst_11 = arith.constant 0.000000e+00 : f32
    %28 = vector.broadcast %cst_11 : f32 to vector<16x32xf32>
    %29 = arith.select %27, %21, %28 : vector<16x32xi1>, vector<16x32xf32>
    %30 = arith.truncf %29 : vector<16x32xf32> to vector<16x32xbf16>
    %c2 = arith.constant 2 : index
    %c0_12 = arith.constant 0 : index
    %c0_13 = arith.constant 0 : index
    %31 = vector.load %arg2[%c2, %c0_12, %c0_13] : memref<3x32x48xbf16, #tpu.memory_space<vmem>>, vector<1x32x48xbf16>
    %32 = vector.shape_cast %31 : vector<1x32x48xbf16> to vector<32x48xbf16>
    %cst_14 = arith.constant dense<0.000000e+00> : vector<16x48xf32>
    %33 = tpu.matmul %30, %32, %cst_14 {dimension_numbers = #tpu.dot_dimension_numbers<[1], [0], [0], [1], [0, 0, 1, 1], [], []>} : vector<16x32xbf16>, vector<32x48xbf16>, vector<16x48xf32> -> vector<16x48xf32>
    %34 = arith.addf %20, %33 : vector<16x48xf32>
    %c0_15 = arith.constant 0 : index
    %c0_16 = arith.constant 0 : index
    %35 = vector.load %arg3[%c0_15, %c0_16] : memref<1x48xf32, #tpu.memory_space<vmem>>, vector<1x48xf32>
    %36 = vector.broadcast %35 : vector<1x48xf32> to vector<16x48xf32>
    %37 = arith.addf %34, %36 : vector<16x48xf32>
    %38 = math.tanh %37 : vector<16x48xf32>
    %c1_i32_17 = arith.constant 1 : i32
    %39 = tpu.dynamic_rotate %38 by %c1_i32_17 dim 0 : vector<16x48xf32>, i32 -> vector<16x48xf32>
    %40 = tpu.iota {dimensions = array<i32: 0>} : vector<16x48xi32>
    %c1_i32_18 = arith.constant 1 : i32
    %41 = vector.broadcast %c1_i32_18 : i32 to vector<16x48xi32>
    %42 = arith.cmpi sge, %40, %41 : vector<16x48xi32>
    %c16_i32_19 = arith.constant 16 : i32
    %43 = vector.broadcast %c16_i32_19 : i32 to vector<16x48xi32>
    %44 = arith.cmpi slt, %40, %43 : vector<16x48xi32>
    %45 = arith.andi %42, %44 : vector<16x48xi1>
    %cst_20 = arith.constant 0.000000e+00 : f32
    %46 = vector.broadcast %cst_20 : f32 to vector<16x48xf32>
    %47 = arith.select %45, %39, %46 : vector<16x48xi1>, vector<16x48xf32>
    %48 = arith.truncf %47 : vector<16x48xf32> to vector<16x48xbf16>
    %c0_21 = arith.constant 0 : index
    %c0_22 = arith.constant 0 : index
    %c0_23 = arith.constant 0 : index
    %49 = vector.load %arg4[%c0_21, %c0_22, %c0_23] : memref<3x48x48xbf16, #tpu.memory_space<vmem>>, vector<1x48x48xbf16>
    %50 = vector.shape_cast %49 : vector<1x48x48xbf16> to vector<48x48xbf16>
    %cst_24 = arith.constant dense<0.000000e+00> : vector<16x48xf32>
    %51 = tpu.matmul %48, %50, %cst_24 {dimension_numbers = #tpu.dot_dimension_numbers<[1], [0], [0], [1], [0, 0, 1, 1], [], []>} : vector<16x48xbf16>, vector<48x48xbf16>, vector<16x48xf32> -> vector<16x48xf32>
    %52 = arith.truncf %38 : vector<16x48xf32> to vector<16x48xbf16>
    %c1_25 = arith.constant 1 : index
    %c0_26 = arith.constant 0 : index
    %c0_27 = arith.constant 0 : index
    %53 = vector.load %arg4[%c1_25, %c0_26, %c0_27] : memref<3x48x48xbf16, #tpu.memory_space<vmem>>, vector<1x48x48xbf16>
    %54 = vector.shape_cast %53 : vector<1x48x48xbf16> to vector<48x48xbf16>
    %cst_28 = arith.constant dense<0.000000e+00> : vector<16x48xf32>
    %55 = tpu.matmul %52, %54, %cst_28 {dimension_numbers = #tpu.dot_dimension_numbers<[1], [0], [0], [1], [0, 0, 1, 1], [], []>} : vector<16x48xbf16>, vector<48x48xbf16>, vector<16x48xf32> -> vector<16x48xf32>
    %56 = arith.addf %51, %55 : vector<16x48xf32>
    %c15_i32_29 = arith.constant 15 : i32
    %57 = tpu.dynamic_rotate %38 by %c15_i32_29 dim 0 : vector<16x48xf32>, i32 -> vector<16x48xf32>
    %58 = tpu.iota {dimensions = array<i32: 0>} : vector<16x48xi32>
    %c0_i32_30 = arith.constant 0 : i32
    %59 = vector.broadcast %c0_i32_30 : i32 to vector<16x48xi32>
    %60 = arith.cmpi sge, %58, %59 : vector<16x48xi32>
    %c15_i32_31 = arith.constant 15 : i32
    %61 = vector.broadcast %c15_i32_31 : i32 to vector<16x48xi32>
    %62 = arith.cmpi slt, %58, %61 : vector<16x48xi32>
    %63 = arith.andi %60, %62 : vector<16x48xi1>
    %cst_32 = arith.constant 0.000000e+00 : f32
    %64 = vector.broadcast %cst_32 : f32 to vector<16x48xf32>
    %65 = arith.select %63, %57, %64 : vector<16x48xi1>, vector<16x48xf32>
    %66 = arith.truncf %65 : vector<16x48xf32> to vector<16x48xbf16>
    %c2_33 = arith.constant 2 : index
    %c0_34 = arith.constant 0 : index
    %c0_35 = arith.constant 0 : index
    %67 = vector.load %arg4[%c2_33, %c0_34, %c0_35] : memref<3x48x48xbf16, #tpu.memory_space<vmem>>, vector<1x48x48xbf16>
    %68 = vector.shape_cast %67 : vector<1x48x48xbf16> to vector<48x48xbf16>
    %cst_36 = arith.constant dense<0.000000e+00> : vector<16x48xf32>
    %69 = tpu.matmul %66, %68, %cst_36 {dimension_numbers = #tpu.dot_dimension_numbers<[1], [0], [0], [1], [0, 0, 1, 1], [], []>} : vector<16x48xbf16>, vector<48x48xbf16>, vector<16x48xf32> -> vector<16x48xf32>
    %70 = arith.addf %56, %69 : vector<16x48xf32>
    %c0_37 = arith.constant 0 : index
    %c0_38 = arith.constant 0 : index
    %71 = vector.load %arg5[%c0_37, %c0_38] : memref<1x48xf32, #tpu.memory_space<vmem>>, vector<1x48xf32>
    %72 = vector.broadcast %71 : vector<1x48xf32> to vector<16x48xf32>
    %73 = arith.addf %70, %72 : vector<16x48xf32>
    %74 = arith.truncf %2 : vector<16x32xf32> to vector<16x32xbf16>
    %c0_39 = arith.constant 0 : index
    %c0_40 = arith.constant 0 : index
    %75 = vector.load %arg6[%c0_39, %c0_40] : memref<32x48xbf16, #tpu.memory_space<vmem>>, vector<32x48xbf16>
    %cst_41 = arith.constant dense<0.000000e+00> : vector<16x48xf32>
    %76 = tpu.matmul %74, %75, %cst_41 {dimension_numbers = #tpu.dot_dimension_numbers<[1], [0], [0], [1], [0, 0, 1, 1], [], []>} : vector<16x32xbf16>, vector<32x48xbf16>, vector<16x48xf32> -> vector<16x48xf32>
    %c0_42 = arith.constant 0 : index
    %c0_43 = arith.constant 0 : index
    %77 = vector.load %arg7[%c0_42, %c0_43] : memref<1x48xf32, #tpu.memory_space<vmem>>, vector<1x48xf32>
    %78 = vector.broadcast %77 : vector<1x48xf32> to vector<16x48xf32>
    %79 = arith.addf %76, %78 : vector<16x48xf32>
    %80 = arith.addf %73, %79 : vector<16x48xf32>
    %81 = math.tanh %80 : vector<16x48xf32>
    %c1_i32_44 = arith.constant 1 : i32
    %82 = tpu.dynamic_rotate %81 by %c1_i32_44 dim 0 : vector<16x48xf32>, i32 -> vector<16x48xf32>
    %83 = tpu.iota {dimensions = array<i32: 0>} : vector<16x48xi32>
    %c1_i32_45 = arith.constant 1 : i32
    %84 = vector.broadcast %c1_i32_45 : i32 to vector<16x48xi32>
    %85 = arith.cmpi sge, %83, %84 : vector<16x48xi32>
    %c16_i32_46 = arith.constant 16 : i32
    %86 = vector.broadcast %c16_i32_46 : i32 to vector<16x48xi32>
    %87 = arith.cmpi slt, %83, %86 : vector<16x48xi32>
    %88 = arith.andi %85, %87 : vector<16x48xi1>
    %cst_47 = arith.constant 0.000000e+00 : f32
    %89 = vector.broadcast %cst_47 : f32 to vector<16x48xf32>
    %90 = arith.select %88, %82, %89 : vector<16x48xi1>, vector<16x48xf32>
    %91 = arith.truncf %90 : vector<16x48xf32> to vector<16x48xbf16>
    %c0_48 = arith.constant 0 : index
    %c0_49 = arith.constant 0 : index
    %c0_50 = arith.constant 0 : index
    %92 = vector.load %arg8[%c0_48, %c0_49, %c0_50] : memref<3x48x32xbf16, #tpu.memory_space<vmem>>, vector<1x48x32xbf16>
    %93 = vector.shape_cast %92 : vector<1x48x32xbf16> to vector<48x32xbf16>
    %cst_51 = arith.constant dense<0.000000e+00> : vector<16x32xf32>
    %94 = tpu.matmul %91, %93, %cst_51 {dimension_numbers = #tpu.dot_dimension_numbers<[1], [0], [0], [1], [0, 0, 1, 1], [], []>} : vector<16x48xbf16>, vector<48x32xbf16>, vector<16x32xf32> -> vector<16x32xf32>
    %95 = arith.truncf %81 : vector<16x48xf32> to vector<16x48xbf16>
    %c1_52 = arith.constant 1 : index
    %c0_53 = arith.constant 0 : index
    %c0_54 = arith.constant 0 : index
    %96 = vector.load %arg8[%c1_52, %c0_53, %c0_54] : memref<3x48x32xbf16, #tpu.memory_space<vmem>>, vector<1x48x32xbf16>
    %97 = vector.shape_cast %96 : vector<1x48x32xbf16> to vector<48x32xbf16>
    %cst_55 = arith.constant dense<0.000000e+00> : vector<16x32xf32>
    %98 = tpu.matmul %95, %97, %cst_55 {dimension_numbers = #tpu.dot_dimension_numbers<[1], [0], [0], [1], [0, 0, 1, 1], [], []>} : vector<16x48xbf16>, vector<48x32xbf16>, vector<16x32xf32> -> vector<16x32xf32>
    %99 = arith.addf %94, %98 : vector<16x32xf32>
    %c15_i32_56 = arith.constant 15 : i32
    %100 = tpu.dynamic_rotate %81 by %c15_i32_56 dim 0 : vector<16x48xf32>, i32 -> vector<16x48xf32>
    %101 = tpu.iota {dimensions = array<i32: 0>} : vector<16x48xi32>
    %c0_i32_57 = arith.constant 0 : i32
    %102 = vector.broadcast %c0_i32_57 : i32 to vector<16x48xi32>
    %103 = arith.cmpi sge, %101, %102 : vector<16x48xi32>
    %c15_i32_58 = arith.constant 15 : i32
    %104 = vector.broadcast %c15_i32_58 : i32 to vector<16x48xi32>
    %105 = arith.cmpi slt, %101, %104 : vector<16x48xi32>
    %106 = arith.andi %103, %105 : vector<16x48xi1>
    %cst_59 = arith.constant 0.000000e+00 : f32
    %107 = vector.broadcast %cst_59 : f32 to vector<16x48xf32>
    %108 = arith.select %106, %100, %107 : vector<16x48xi1>, vector<16x48xf32>
    %109 = arith.truncf %108 : vector<16x48xf32> to vector<16x48xbf16>
    %c2_60 = arith.constant 2 : index
    %c0_61 = arith.constant 0 : index
    %c0_62 = arith.constant 0 : index
    %110 = vector.load %arg8[%c2_60, %c0_61, %c0_62] : memref<3x48x32xbf16, #tpu.memory_space<vmem>>, vector<1x48x32xbf16>
    %111 = vector.shape_cast %110 : vector<1x48x32xbf16> to vector<48x32xbf16>
    %cst_63 = arith.constant dense<0.000000e+00> : vector<16x32xf32>
    %112 = tpu.matmul %109, %111, %cst_63 {dimension_numbers = #tpu.dot_dimension_numbers<[1], [0], [0], [1], [0, 0, 1, 1], [], []>} : vector<16x48xbf16>, vector<48x32xbf16>, vector<16x32xf32> -> vector<16x32xf32>
    %113 = arith.addf %99, %112 : vector<16x32xf32>
    %c0_64 = arith.constant 0 : index
    %c0_65 = arith.constant 0 : index
    %114 = vector.load %arg9[%c0_64, %c0_65] : memref<1x32xf32, #tpu.memory_space<vmem>>, vector<1x32xf32>
    %115 = vector.broadcast %114 : vector<1x32xf32> to vector<16x32xf32>
    %116 = arith.addf %113, %115 : vector<16x32xf32>
    %117 = math.tanh %116 : vector<16x32xf32>
    %c1_i32_66 = arith.constant 1 : i32
    %118 = tpu.dynamic_rotate %117 by %c1_i32_66 dim 0 : vector<16x32xf32>, i32 -> vector<16x32xf32>
    %119 = tpu.iota {dimensions = array<i32: 0>} : vector<16x32xi32>
    %c1_i32_67 = arith.constant 1 : i32
    %120 = vector.broadcast %c1_i32_67 : i32 to vector<16x32xi32>
    %121 = arith.cmpi sge, %119, %120 : vector<16x32xi32>
    %c16_i32_68 = arith.constant 16 : i32
    %122 = vector.broadcast %c16_i32_68 : i32 to vector<16x32xi32>
    %123 = arith.cmpi slt, %119, %122 : vector<16x32xi32>
    %124 = arith.andi %121, %123 : vector<16x32xi1>
    %cst_69 = arith.constant 0.000000e+00 : f32
    %125 = vector.broadcast %cst_69 : f32 to vector<16x32xf32>
    %126 = arith.select %124, %118, %125 : vector<16x32xi1>, vector<16x32xf32>
    %127 = arith.truncf %126 : vector<16x32xf32> to vector<16x32xbf16>
    %c0_70 = arith.constant 0 : index
    %c0_71 = arith.constant 0 : index
    %c0_72 = arith.constant 0 : index
    %128 = vector.load %arg10[%c0_70, %c0_71, %c0_72] : memref<3x32x128xbf16, #tpu.memory_space<vmem>>, vector<1x32x128xbf16>
    %129 = vector.shape_cast %128 : vector<1x32x128xbf16> to vector<32x128xbf16>
    %cst_73 = arith.constant dense<0.000000e+00> : vector<16x128xf32>
    %130 = tpu.matmul %127, %129, %cst_73 {dimension_numbers = #tpu.dot_dimension_numbers<[1], [0], [0], [1], [0, 0, 1, 1], [], []>} : vector<16x32xbf16>, vector<32x128xbf16>, vector<16x128xf32> -> vector<16x128xf32>
    %131 = arith.truncf %117 : vector<16x32xf32> to vector<16x32xbf16>
    %c1_74 = arith.constant 1 : index
    %c0_75 = arith.constant 0 : index
    %c0_76 = arith.constant 0 : index
    %132 = vector.load %arg10[%c1_74, %c0_75, %c0_76] : memref<3x32x128xbf16, #tpu.memory_space<vmem>>, vector<1x32x128xbf16>
    %133 = vector.shape_cast %132 : vector<1x32x128xbf16> to vector<32x128xbf16>
    %cst_77 = arith.constant dense<0.000000e+00> : vector<16x128xf32>
    %134 = tpu.matmul %131, %133, %cst_77 {dimension_numbers = #tpu.dot_dimension_numbers<[1], [0], [0], [1], [0, 0, 1, 1], [], []>} : vector<16x32xbf16>, vector<32x128xbf16>, vector<16x128xf32> -> vector<16x128xf32>
    %135 = arith.addf %130, %134 : vector<16x128xf32>
    %c15_i32_78 = arith.constant 15 : i32
    %136 = tpu.dynamic_rotate %117 by %c15_i32_78 dim 0 : vector<16x32xf32>, i32 -> vector<16x32xf32>
    %137 = tpu.iota {dimensions = array<i32: 0>} : vector<16x32xi32>
    %c0_i32_79 = arith.constant 0 : i32
    %138 = vector.broadcast %c0_i32_79 : i32 to vector<16x32xi32>
    %139 = arith.cmpi sge, %137, %138 : vector<16x32xi32>
    %c15_i32_80 = arith.constant 15 : i32
    %140 = vector.broadcast %c15_i32_80 : i32 to vector<16x32xi32>
    %141 = arith.cmpi slt, %137, %140 : vector<16x32xi32>
    %142 = arith.andi %139, %141 : vector<16x32xi1>
    %cst_81 = arith.constant 0.000000e+00 : f32
    %143 = vector.broadcast %cst_81 : f32 to vector<16x32xf32>
    %144 = arith.select %142, %136, %143 : vector<16x32xi1>, vector<16x32xf32>
    %145 = arith.truncf %144 : vector<16x32xf32> to vector<16x32xbf16>
    %c2_82 = arith.constant 2 : index
    %c0_83 = arith.constant 0 : index
    %c0_84 = arith.constant 0 : index
    %146 = vector.load %arg10[%c2_82, %c0_83, %c0_84] : memref<3x32x128xbf16, #tpu.memory_space<vmem>>, vector<1x32x128xbf16>
    %147 = vector.shape_cast %146 : vector<1x32x128xbf16> to vector<32x128xbf16>
    %cst_85 = arith.constant dense<0.000000e+00> : vector<16x128xf32>
    %148 = tpu.matmul %145, %147, %cst_85 {dimension_numbers = #tpu.dot_dimension_numbers<[1], [0], [0], [1], [0, 0, 1, 1], [], []>} : vector<16x32xbf16>, vector<32x128xbf16>, vector<16x128xf32> -> vector<16x128xf32>
    %149 = arith.addf %135, %148 : vector<16x128xf32>
    %c0_86 = arith.constant 0 : index
    %c0_87 = arith.constant 0 : index
    %150 = vector.load %arg11[%c0_86, %c0_87] : memref<1x128xf32, #tpu.memory_space<vmem>>, vector<1x128xf32>
    %151 = vector.broadcast %150 : vector<1x128xf32> to vector<16x128xf32>
    %152 = arith.addf %149, %151 : vector<16x128xf32>
    %153 = arith.truncf %81 : vector<16x48xf32> to vector<16x48xbf16>
    %c0_88 = arith.constant 0 : index
    %c0_89 = arith.constant 0 : index
    %154 = vector.load %arg12[%c0_88, %c0_89] : memref<48x128xbf16, #tpu.memory_space<vmem>>, vector<48x128xbf16>
    %cst_90 = arith.constant dense<0.000000e+00> : vector<16x128xf32>
    %155 = tpu.matmul %153, %154, %cst_90 {dimension_numbers = #tpu.dot_dimension_numbers<[1], [0], [0], [1], [0, 0, 1, 1], [], []>} : vector<16x48xbf16>, vector<48x128xbf16>, vector<16x128xf32> -> vector<16x128xf32>
    %c0_91 = arith.constant 0 : index
    %c0_92 = arith.constant 0 : index
    %156 = vector.load %arg13[%c0_91, %c0_92] : memref<1x128xf32, #tpu.memory_space<vmem>>, vector<1x128xf32>
    %157 = vector.broadcast %156 : vector<1x128xf32> to vector<16x128xf32>
    %158 = arith.addf %155, %157 : vector<16x128xf32>
    %159 = arith.addf %152, %158 : vector<16x128xf32>
    %160 = math.tanh %159 : vector<16x128xf32>
    %161 = arith.truncf %160 : vector<16x128xf32> to vector<16x128xbf16>
    %c0_93 = arith.constant 0 : index
    %c0_94 = arith.constant 0 : index
    %162 = vector.load %arg14[%c0_93, %c0_94] : memref<128x128xbf16, #tpu.memory_space<vmem>>, vector<128x128xbf16>
    %cst_95 = arith.constant dense<0.000000e+00> : vector<16x128xf32>
    %163 = tpu.matmul %161, %162, %cst_95 {dimension_numbers = #tpu.dot_dimension_numbers<[1], [0], [0], [1], [0, 0, 1, 1], [], []>} : vector<16x128xbf16>, vector<128x128xbf16>, vector<16x128xf32> -> vector<16x128xf32>
    %cst_96 = arith.constant dense<0xFF800000> : vector<128xf32>
    %164 = vector.multi_reduction <maximumf>, %163, %cst_96 [0] : vector<16x128xf32> to vector<128xf32>
    %165 = vector.shape_cast %164 : vector<128xf32> to vector<1x128xf32>
    %166 = vector.broadcast %165 : vector<1x128xf32> to vector<16x128xf32>
    %167 = arith.subf %163, %166 : vector<16x128xf32>
    %168 = math.exp %167 : vector<16x128xf32>
    %cst_97 = arith.constant dense<0.000000e+00> : vector<128xf32>
    %169 = vector.multi_reduction <add>, %168, %cst_97 [0] : vector<16x128xf32> to vector<128xf32>
    %170 = vector.shape_cast %169 : vector<128xf32> to vector<1x128xf32>
    %171 = vector.broadcast %170 : vector<1x128xf32> to vector<16x128xf32>
    %172 = arith.divf %168, %171 : vector<16x128xf32>
    %c0_98 = arith.constant 0 : index
    %c0_99 = arith.constant 0 : index
    %c0_100 = arith.constant 0 : index
    %173 = vector.load %arg18[%c0_98, %c0_99, %c0_100] : memref<1x16x128xf32, #tpu.memory_space<vmem>>, vector<1x16x128xf32>
    %174 = vector.shape_cast %173 : vector<1x16x128xf32> to vector<16x128xf32>
    %175 = vector.shape_cast %172 : vector<16x128xf32> to vector<1x16x128xf32>
    tpu.vector_store %arg18[%c0_98, %c0_99, %c0_100], %175 {strides = array<i32>} : memref<1x16x128xf32, #tpu.memory_space<vmem>>, vector<1x16x128xf32>,
    %cst_101 = arith.constant dense<0.000000e+00> : vector<128x128xf32>
    %176 = tpu.matmul %172, %160, %cst_101 {dimension_numbers = #tpu.dot_dimension_numbers<[0], [0], [1], [1], [0, 1, 1, 1], [], []>} : vector<16x128xf32>, vector<16x128xf32>, vector<128x128xf32> -> vector<128x128xf32>
    %c0_102 = arith.constant 0 : index
    %c0_103 = arith.constant 0 : index
    %c0_104 = arith.constant 0 : index
    %177 = vector.load %arg19[%c0_102, %c0_103, %c0_104] : memref<1x128x128xf32, #tpu.memory_space<vmem>>, vector<1x128x128xf32>
    %178 = vector.shape_cast %177 : vector<1x128x128xf32> to vector<128x128xf32>
    %179 = vector.shape_cast %176 : vector<128x128xf32> to vector<1x128x128xf32>
    tpu.vector_store %arg19[%c0_102, %c0_103, %c0_104], %179 {strides = array<i32>} : memref<1x128x128xf32, #tpu.memory_space<vmem>>, vector<1x128x128xf32>,
    %c0_105 = arith.constant 0 : index
    %c0_106 = arith.constant 0 : index
    %180 = vector.load %arg15[%c0_105, %c0_106] : memref<128x128xf32, #tpu.memory_space<vmem>>, vector<128x128xf32>
    %cst_107 = arith.constant dense<0.000000e+00> : vector<16x128xf32>
    %181 = tpu.matmul %160, %180, %cst_107 {dimension_numbers = #tpu.dot_dimension_numbers<[1], [0], [0], [1], [0, 0, 1, 1], [], []>} : vector<16x128xf32>, vector<128x128xf32>, vector<16x128xf32> -> vector<16x128xf32>
    %182 = arith.mulf %172, %181 : vector<16x128xf32>
    %cst_108 = arith.constant dense<0.000000e+00> : vector<128xf32>
    %183 = vector.multi_reduction <add>, %182, %cst_108 [0] : vector<16x128xf32> to vector<128xf32>
    %184 = vector.shape_cast %183 : vector<128xf32> to vector<1x128xf32>
    %c0_109 = arith.constant 0 : index
    %c0_110 = arith.constant 0 : index
    %185 = vector.load %arg16[%c0_109, %c0_110] : memref<1x128xf32, #tpu.memory_space<vmem>>, vector<1x128xf32>
    %186 = arith.addf %184, %185 : vector<1x128xf32>
    %c0_111 = arith.constant 0 : index
    %c0_112 = arith.constant 0 : index
    %c0_113 = arith.constant 0 : index
    %187 = vector.load %arg17[%c0_111, %c0_112, %c0_113] : memref<1x1x128xf32, #tpu.memory_space<vmem>>, vector<1x1x128xf32>
    %188 = vector.shape_cast %187 : vector<1x1x128xf32> to vector<1x128xf32>
    %189 = vector.shape_cast %186 : vector<1x128xf32> to vector<1x1x128xf32>
    tpu.vector_store %arg17[%c0_111, %c0_112, %c0_113], %189 {strides = array<i32>} : memref<1x1x128xf32, #tpu.memory_space<vmem>>, vector<1x1x128xf32>,
    return
  }
  func.func @transform_0(%arg0: i32) -> (i32, i32, i32) {
    %c0_i32 = arith.constant 0 : i32
    %c0_i32_0 = arith.constant 0 : i32
    %c0_i32_1 = arith.constant 0 : i32
    return %arg0, %c0_i32, %c0_i32_0 : i32, i32, i32
  }
  func.func @transform_1(%arg0: i32) -> (i32, i32, i32) {
    %c0_i32 = arith.constant 0 : i32
    %c0_i32_0 = arith.constant 0 : i32
    %c0_i32_1 = arith.constant 0 : i32
    %c0_i32_2 = arith.constant 0 : i32
    return %c0_i32, %c0_i32_0, %c0_i32_1 : i32, i32, i32
  }
  func.func @transform_2(%arg0: i32) -> (i32, i32) {
    %c0_i32 = arith.constant 0 : i32
    %c0_i32_0 = arith.constant 0 : i32
    %c0_i32_1 = arith.constant 0 : i32
    return %c0_i32, %c0_i32_0 : i32, i32
  }
  func.func @transform_3(%arg0: i32) -> (i32, i32, i32) {
    %c0_i32 = arith.constant 0 : i32
    %c0_i32_0 = arith.constant 0 : i32
    %c0_i32_1 = arith.constant 0 : i32
    %c0_i32_2 = arith.constant 0 : i32
    return %c0_i32, %c0_i32_0, %c0_i32_1 : i32, i32, i32
  }
  func.func @transform_4(%arg0: i32) -> (i32, i32) {
    %c0_i32 = arith.constant 0 : i32
    %c0_i32_0 = arith.constant 0 : i32
    %c0_i32_1 = arith.constant 0 : i32
    return %c0_i32, %c0_i32_0 : i32, i32
  }
  func.func @transform_5(%arg0: i32) -> (i32, i32) {
    %c0_i32 = arith.constant 0 : i32
    %c0_i32_0 = arith.constant 0 : i32
    %c0_i32_1 = arith.constant 0 : i32
    return %c0_i32, %c0_i32_0 : i32, i32
  }
  func.func @transform_6(%arg0: i32) -> (i32, i32) {
    %c0_i32 = arith.constant 0 : i32
    %c0_i32_0 = arith.constant 0 : i32
    %c0_i32_1 = arith.constant 0 : i32
    return %c0_i32, %c0_i32_0 : i32, i32
  }
  func.func @transform_7(%arg0: i32) -> (i32, i32, i32) {
    %c0_i32 = arith.constant 0 : i32
    %c0_i32_0 = arith.constant 0 : i32
    %c0_i32_1 = arith.constant 0 : i32
    %c0_i32_2 = arith.constant 0 : i32
    return %c0_i32, %c0_i32_0, %c0_i32_1 : i32, i32, i32
  }
  func.func @transform_8(%arg0: i32) -> (i32, i32) {
    %c0_i32 = arith.constant 0 : i32
    %c0_i32_0 = arith.constant 0 : i32
    %c0_i32_1 = arith.constant 0 : i32
    return %c0_i32, %c0_i32_0 : i32, i32
  }
  func.func @transform_9(%arg0: i32) -> (i32, i32, i32) {
    %c0_i32 = arith.constant 0 : i32
    %c0_i32_0 = arith.constant 0 : i32
    %c0_i32_1 = arith.constant 0 : i32
    %c0_i32_2 = arith.constant 0 : i32
    return %c0_i32, %c0_i32_0, %c0_i32_1 : i32, i32, i32
  }
  func.func @transform_10(%arg0: i32) -> (i32, i32) {
    %c0_i32 = arith.constant 0 : i32
    %c0_i32_0 = arith.constant 0 : i32
    %c0_i32_1 = arith.constant 0 : i32
    return %c0_i32, %c0_i32_0 : i32, i32
  }
  func.func @transform_11(%arg0: i32) -> (i32, i32) {
    %c0_i32 = arith.constant 0 : i32
    %c0_i32_0 = arith.constant 0 : i32
    %c0_i32_1 = arith.constant 0 : i32
    return %c0_i32, %c0_i32_0 : i32, i32
  }
  func.func @transform_12(%arg0: i32) -> (i32, i32) {
    %c0_i32 = arith.constant 0 : i32
    %c0_i32_0 = arith.constant 0 : i32
    %c0_i32_1 = arith.constant 0 : i32
    return %c0_i32, %c0_i32_0 : i32, i32
  }
  func.func @transform_13(%arg0: i32) -> (i32, i32) {
    %c0_i32 = arith.constant 0 : i32
    %c0_i32_0 = arith.constant 0 : i32
    %c0_i32_1 = arith.constant 0 : i32
    return %c0_i32, %c0_i32_0 : i32, i32
  }
  func.func @transform_14(%arg0: i32) -> (i32, i32) {
    %c0_i32 = arith.constant 0 : i32
    %c0_i32_0 = arith.constant 0 : i32
    %c0_i32_1 = arith.constant 0 : i32
    return %c0_i32, %c0_i32_0 : i32, i32
  }
  func.func @transform_15(%arg0: i32) -> (i32, i32) {
    %c0_i32 = arith.constant 0 : i32
    %c0_i32_0 = arith.constant 0 : i32
    %c0_i32_1 = arith.constant 0 : i32
    return %c0_i32, %c0_i32_0 : i32, i32
  }
  func.func @transform_16(%arg0: i32) -> (i32, i32, i32) {
    %c0_i32 = arith.constant 0 : i32
    %c0_i32_0 = arith.constant 0 : i32
    %c0_i32_1 = arith.constant 0 : i32
    return %arg0, %c0_i32, %c0_i32_0 : i32, i32, i32
  }
  func.func @transform_17(%arg0: i32) -> (i32, i32, i32) {
    %c0_i32 = arith.constant 0 : i32
    %c0_i32_0 = arith.constant 0 : i32
    %c0_i32_1 = arith.constant 0 : i32
    return %arg0, %c0_i32, %c0_i32_0 : i32, i32, i32
  }
  func.func @transform_18(%arg0: i32) -> (i32, i32, i32) {
    %c0_i32 = arith.constant 0 : i32
    %c0_i32_0 = arith.constant 0 : i32
    %c0_i32_1 = arith.constant 0 : i32
    return %arg0, %c0_i32, %c0_i32_0 : i32, i32, i32
  }
}

</mosaic_0001>

<llo_original>
// kernel: tpu_custom_call.1
$region0: #{tpu_custom_call.1}
  #allocation0 [shape = 'u32[]', space=smem, size = 0x4, offset = 0x4, fixed_abs, tag = 'smem constant byte address 0x4 - core index']
  #allocation1 [shape = 'u32[144,128]{1,0:T(1,128)}', space=vmem, size = 0x12000, scoped, tag = 'internal scratch']
  %s0 = inlined_call_operand.vmem [shape: bf16[2,16,32], index: 0, kind: input, shape index: {}]
  %s1 = inlined_call_operand.hbm [shape: bf16[3,32,48], index: 1, kind: input, shape index: {}]
  %s2 = inlined_call_operand.vmem [shape: f32[1,48], index: 2, kind: input, shape index: {}]
  %s3 = inlined_call_operand.hbm [shape: bf16[3,48,48], index: 3, kind: input, shape index: {}]
  %s4 = inlined_call_operand.hbm [shape: f32[1,48], index: 4, kind: input, shape index: {}]
  %s5 = inlined_call_operand.hbm [shape: bf16[32,48], index: 5, kind: input, shape index: {}]
  %s6 = inlined_call_operand.hbm [shape: f32[1,48], index: 6, kind: input, shape index: {}]
  %s7 = inlined_call_operand.vmem [shape: bf16[3,48,32], index: 7, kind: input, shape index: {}]
  %s8 = inlined_call_operand.hbm [shape: f32[1,32], index: 8, kind: input, shape index: {}]
  %s9 = inlined_call_operand.hbm [shape: bf16[3,32,128], index: 9, kind: input, shape index: {}]
  %s10 = inlined_call_operand.hbm [shape: f32[1,128], index: 10, kind: input, shape index: {}]
  %s11 = inlined_call_operand.hbm [shape: bf16[48,128], index: 11, kind: input, shape index: {}]
  %s12 = inlined_call_operand.hbm [shape: f32[1,128], index: 12, kind: input, shape index: {}]
  %s13 = inlined_call_operand.hbm [shape: bf16[128,128], index: 13, kind: input, shape index: {}]
  %s14 = inlined_call_operand.vmem [shape: f32[128,128], index: 14, kind: input, shape index: {}]
  %s15 = inlined_call_operand.vmem [shape: f32[1,128], index: 15, kind: input, shape index: {}]
  %s16 = inlined_call_operand.hbm [shape: f32[2,1,128], index: 16, kind: output, shape index: {0}]
  %s17 = inlined_call_operand.hbm [shape: f32[2,16,128], index: 17, kind: output, shape index: {1}]
  %s18 = inlined_call_operand.hbm [shape: f32[2,128,128], index: 18, kind: output, shape index: {2}]
  %19 = xla_tuple %s16, %s17, %s18
  %s20 = sld [smem:[#allocation0]]
  $region157: #{tpu_custom_call.1} parent=0
    _
  %s22 = ssub.s32 1, %s20
  %s23 = scalar_select 0, %s22, %s20
  $region1: #{tpu_custom_call.1} parent=0
    #allocation2 [shape = 'u8[24576]{0}', space=vmem, size = 0x6000, scoped, tag = 'input window, operand 1, single buffered']
    #allocation3 [shape = 's32[2]{0}', space=sflag, size = 0x8, scoped, tag = 'scoped memory for tpu_custom_call.1']
    #allocation4 [shape = 's32[2]{0}', space=sflag, size = 0x8, scoped, tag = 'scoped memory for tpu_custom_call.1']
    #allocation5 [shape = 'u8[36864]{0}', space=vmem, size = 0x9000, scoped, tag = 'input window, operand 3, single buffered']
    #allocation6 [shape = 's32[1]{0}', space=sflag, size = 0x4, scoped, tag = 'scoped memory for tpu_custom_call.1']
    #allocation7 [shape = 'u8[512]{0}', space=vmem, size = 0x400, scoped, tag = 'input window, operand 4, single buffered']
    #allocation8 [shape = 'u8[8192]{0}', space=vmem, size = 0x2000, scoped, tag = 'input window, operand 5, single buffered']
    #allocation9 [shape = 's32[1]{0}', space=sflag, size = 0x4, scoped, tag = 'scoped memory for tpu_custom_call.1']
    #allocation10 [shape = 'u8[512]{0}', space=vmem, size = 0x400, scoped, tag = 'input window, operand 6, single buffered']
    #allocation11 [shape = 'u8[512]{0}', space=vmem, size = 0x400, scoped, tag = 'input window, operand 8, single buffered']
    #allocation12 [shape = 's32[1]{0}', space=sflag, size = 0x4, scoped, tag = 'scoped memory for tpu_custom_call.1']
    #allocation13 [shape = 'u8[24576]{0}', space=vmem, size = 0x6000, scoped, tag = 'input window, operand 9, single buffered']
    #allocation14 [shape = 'u8[512]{0}', space=vmem, size = 0x400, scoped, tag = 'input window, operand 10, single buffered']
    #allocation15 [shape = 's32[1]{0}', space=sflag, size = 0x4, scoped, tag = 'scoped memory for tpu_custom_call.1']
    #allocation16 [shape = 'u8[12288]{0}', space=vmem, size = 0x3000, scoped, tag = 'input window, operand 11, single buffered']
    #allocation17 [shape = 'u8[512]{0}', space=vmem, size = 0x400, scoped, tag = 'input window, operand 12, single buffered']
    #allocation18 [shape = 's32[1]{0}', space=sflag, size = 0x4, scoped, tag = 'scoped memory for tpu_custom_call.1']
    #allocation19 [shape = 'u8[32768]{0}', space=vmem, size = 0x8000, scoped, tag = 'input window, operand 13, single buffered']
    #allocation20 [shape = 'u8[1024]{0}', space=vmem, size = 0x400, scoped, tag = 'output window, operand 0']
    #allocation21 [shape = 'u8[16384]{0}', space=vmem, size = 0x4000, scoped, tag = 'output window, operand 1']
    #allocation22 [shape = 's32[2]{0}', space=sflag, size = 0x8, scoped, tag = 'scoped memory for tpu_custom_call.1']
    #allocation23 [shape = 'u8[131072]{0}', space=vmem, size = 0x20000, scoped, tag = 'output window, operand 2']
    %24 = vsyncpa [#allocation3], 0
    %25 = vsyncpa [#allocation6], 0
    %26 = vsyncpa [#allocation9], 0
    %27 = vsyncpa [#allocation12], 0
    %28 = vsyncpa [#allocation15], 0
    %29 = vsyncpa [#allocation18], 0
    %30 = vsyncpa [#allocation4], 0
    %s31 = scalar_lea.sflag [#allocation4], 1
    %32 = vsyncpa %s31, 0
    %33 = vsyncpa [#allocation22], 0
    %s34 = scalar_lea.sflag [#allocation22], 1
    %35 = vsyncpa %s34, 0
    loop: start=0, step=1, limit=4
    $region2: #{tpu_custom_call.1} parent=1 // loop_pre_header
      _
    $region3: #{tpu_custom_call.1} parent=1 // loop_header
      %s37 = sphi 0, %s41
      %p38 = scmp.ge.s32.totalorder %s37, 4
      %s47 = sphi 0, %s49
      %s50 = sphi 0, %s47
      %s51 = sphi 0, %s50
      %s67 = sphi 0, %s51
      %s71 = sphi 0, %s71
      %s73 = sphi 0, %s71
      %s74 = sphi 0, %s73
      %s88 = sphi 0, %s74
      %s92 = sphi 0, %s92
      %s94 = sphi 0, %s92
      %s95 = sphi 0, %s94
      %s109 = sphi 0, %s95
      %s113 = sphi 0, %s113
      %s115 = sphi 0, %s113
      %s116 = sphi 0, %s115
      %s130 = sphi 0, %s116
      %s134 = sphi 0, %s134
      %s136 = sphi 0, %s134
      %s137 = sphi 0, %s136
      %s151 = sphi 0, %s137
      %s155 = sphi 0, %s155
      %s157 = sphi 0, %s155
      %s158 = sphi 0, %s157
      %s172 = sphi 0, %s158
      %s176 = sphi 0, %s176
      %s178 = sphi 0, %s176
      %s179 = sphi 0, %s178
      %s193 = sphi 0, %s179
      %s197 = sphi 0, %s197
      %s199 = sphi 0, %s197
      %s200 = sphi 0, %s199
      %s214 = sphi 0, %s200
      %s218 = sphi 0, %s218
      %s220 = sphi 0, %s218
      %s221 = sphi 0, %s220
      %s235 = sphi 0, %s221
      %s239 = sphi 0, %s239
      %s241 = sphi 0, %s239
      %s242 = sphi 0, %s241
      %s256 = sphi 0, %s242
      %s260 = sphi 0, %s260
      %s262 = sphi 0, %s260
      %s263 = sphi 0, %s262
      %s277 = sphi 0, %s263
      %s281 = sphi 0, %s281
      %s283 = sphi 0, %s281
      %s284 = sphi 0, %s283
      %s298 = sphi 0, %s284
      %s302 = sphi 0, %s302
      %s304 = sphi 0, %s302
      %s305 = sphi 0, %s304
      %s319 = sphi 0, %s305
      %s323 = sphi 0, %s323
      %s325 = sphi 0, %s323
      %s326 = sphi 0, %s325
      %s340 = sphi 0, %s326
      %s344 = sphi 0, %s344
      %s346 = sphi 0, %s344
      %s347 = sphi 0, %s346
      %s361 = sphi 0, %s347
      %s365 = sphi 0, %s365
      %s367 = sphi 0, %s365
      %s368 = sphi 0, %s367
      %s382 = sphi 0, %s368
      %s388 = sphi 0, %s390
      %s391 = sphi 0, %s388
      %s392 = sphi 0, %s391
      %s408 = sphi 0, %s392
      %s414 = sphi 0, %s416
      %s417 = sphi 0, %s414
      %s418 = sphi 0, %s417
      %s434 = sphi 0, %s418
      %s440 = sphi 0, %s442
      %s443 = sphi 0, %s440
      %s444 = sphi 0, %s443
      %s460 = sphi 0, %s444
    $region4: #{tpu_custom_call.1} parent=1 // loop_header_branch
      %40 = sbr.rel (%p38) target = $region8
    $region5: #{tpu_custom_call.1} parent=1 // loop_body
      %s42 = ssub.s32 %s37, 1
      %s43 = ssub.s32 %s37, 2
      %s44 = sadd.s32 %s37, 1
      %s45 = ssub.s32 %s37, %s44
      %p46 = scmp.eq.s32.totalorder %s45, 0
      %s48 = sadd.s32 %s47, 1
      %s49 = scalar_select %p46, %s47, %s48
      %p52 = pneg %p46
      %p53 = scmp.eq.s32.totalorder %s37, 1
      %p54 = por %p52, %p53
      %p55 = scmp.ne.s32.totalorder %s47, %s50
      %p56 = scmp.eq.s32.totalorder %s37, 0
      %p57 = por %p55, %p56
      %p58 = scmp.ne.s32.totalorder %s47, %s50
      %p59 = scmp.eq.s32.totalorder %s42, 1
      %p60 = por %p58, %p59
      %p61 = scmp.ne.s32.totalorder %s50, %s51
      %p62 = scmp.eq.s32.totalorder %s42, 0
      %p63 = por %p61, %p62
      %p64 = scmp.ne.s32.totalorder %s50, %s51
      %p65 = scmp.eq.s32.totalorder %s43, 1
      %p66 = por %p64, %p65
      %p68 = scmp.ne.s32.totalorder %s51, %s67
      %p69 = scmp.eq.s32.totalorder %s43, 0
      %p70 = por %p68, %p69
      %s72 = sadd.s32 %s71, 1
      %p75 = scmp.eq.s32.totalorder %s37, 1
      %p76 = scmp.ne.s32.totalorder %s71, %s73
      %p77 = scmp.eq.s32.totalorder %s37, 0
      %p78 = por %p76, %p77
      %p79 = scmp.ne.s32.totalorder %s71, %s73
      %p80 = scmp.eq.s32.totalorder %s42, 1
      %p81 = por %p79, %p80
      %p82 = scmp.ne.s32.totalorder %s73, %s74
      %p83 = scmp.eq.s32.totalorder %s42, 0
      %p84 = por %p82, %p83
      %p85 = scmp.ne.s32.totalorder %s73, %s74
      %p86 = scmp.eq.s32.totalorder %s43, 1
      %p87 = por %p85, %p86
      %p89 = scmp.ne.s32.totalorder %s74, %s88
      %p90 = scmp.eq.s32.totalorder %s43, 0
      %p91 = por %p89, %p90
      %s93 = sadd.s32 %s92, 1
      %p96 = scmp.eq.s32.totalorder %s37, 1
      %p97 = scmp.ne.s32.totalorder %s92, %s94
      %p98 = scmp.eq.s32.totalorder %s37, 0
      %p99 = por %p97, %p98
      %p100 = scmp.ne.s32.totalorder %s92, %s94
      %p101 = scmp.eq.s32.totalorder %s42, 1
      %p102 = por %p100, %p101
      %p103 = scmp.ne.s32.totalorder %s94, %s95
      %p104 = scmp.eq.s32.totalorder %s42, 0
      %p105 = por %p103, %p104
      %p106 = scmp.ne.s32.totalorder %s94, %s95
      %p107 = scmp.eq.s32.totalorder %s43, 1
      %p108 = por %p106, %p107
      %p110 = scmp.ne.s32.totalorder %s95, %s109
      %p111 = scmp.eq.s32.totalorder %s43, 0
      %p112 = por %p110, %p111
      %s114 = sadd.s32 %s113, 1
      %p117 = scmp.eq.s32.totalorder %s37, 1
      %p118 = scmp.ne.s32.totalorder %s113, %s115
      %p119 = scmp.eq.s32.totalorder %s37, 0
      %p120 = por %p118, %p119
      %p121 = scmp.ne.s32.totalorder %s113, %s115
      %p122 = scmp.eq.s32.totalorder %s42, 1
      %p123 = por %p121, %p122
      %p124 = scmp.ne.s32.totalorder %s115, %s116
      %p125 = scmp.eq.s32.totalorder %s42, 0
      %p126 = por %p124, %p125
      %p127 = scmp.ne.s32.totalorder %s115, %s116
      %p128 = scmp.eq.s32.totalorder %s43, 1
      %p129 = por %p127, %p128
      %p131 = scmp.ne.s32.totalorder %s116, %s130
      %p132 = scmp.eq.s32.totalorder %s43, 0
      %p133 = por %p131, %p132
      %s135 = sadd.s32 %s134, 1
      %p138 = scmp.eq.s32.totalorder %s37, 1
      %p139 = scmp.ne.s32.totalorder %s134, %s136
      %p140 = scmp.eq.s32.totalorder %s37, 0
      %p141 = por %p139, %p140
      %p142 = scmp.ne.s32.totalorder %s134, %s136
      %p143 = scmp.eq.s32.totalorder %s42, 1
      %p144 = por %p142, %p143
      %p145 = scmp.ne.s32.totalorder %s136, %s137
      %p146 = scmp.eq.s32.totalorder %s42, 0
      %p147 = por %p145, %p146
      %p148 = scmp.ne.s32.totalorder %s136, %s137
      %p149 = scmp.eq.s32.totalorder %s43, 1
      %p150 = por %p148, %p149
      %p152 = scmp.ne.s32.totalorder %s137, %s151
      %p153 = scmp.eq.s32.totalorder %s43, 0
      %p154 = por %p152, %p153
      %s156 = sadd.s32 %s155, 1
      %p159 = scmp.eq.s32.totalorder %s37, 1
      %p160 = scmp.ne.s32.totalorder %s155, %s157
      %p161 = scmp.eq.s32.totalorder %s37, 0
      %p162 = por %p160, %p161
      %p163 = scmp.ne.s32.totalorder %s155, %s157
      %p164 = scmp.eq.s32.totalorder %s42, 1
      %p165 = por %p163, %p164
      %p166 = scmp.ne.s32.totalorder %s157, %s158
      %p167 = scmp.eq.s32.totalorder %s42, 0
      %p168 = por %p166, %p167
      %p169 = scmp.ne.s32.totalorder %s157, %s158
      %p170 = scmp.eq.s32.totalorder %s43, 1
      %p171 = por %p169, %p170
      %p173 = scmp.ne.s32.totalorder %s158, %s172
      %p174 = scmp.eq.s32.totalorder %s43, 0
      %p175 = por %p173, %p174
      %s177 = sadd.s32 %s176, 1
      %p180 = scmp.eq.s32.totalorder %s37, 1
      %p181 = scmp.ne.s32.totalorder %s176, %s178
      %p182 = scmp.eq.s32.totalorder %s37, 0
      %p183 = por %p181, %p182
      %p184 = scmp.ne.s32.totalorder %s176, %s178
      %p185 = scmp.eq.s32.totalorder %s42, 1
      %p186 = por %p184, %p185
      %p187 = scmp.ne.s32.totalorder %s178, %s179
      %p188 = scmp.eq.s32.totalorder %s42, 0
      %p189 = por %p187, %p188
      %p190 = scmp.ne.s32.totalorder %s178, %s179
      %p191 = scmp.eq.s32.totalorder %s43, 1
      %p192 = por %p190, %p191
      %p194 = scmp.ne.s32.totalorder %s179, %s193
      %p195 = scmp.eq.s32.totalorder %s43, 0
      %p196 = por %p194, %p195
      %s198 = sadd.s32 %s197, 1
      %p201 = scmp.eq.s32.totalorder %s37, 1
      %p202 = scmp.ne.s32.totalorder %s197, %s199
      %p203 = scmp.eq.s32.totalorder %s37, 0
      %p204 = por %p202, %p203
      %p205 = scmp.ne.s32.totalorder %s197, %s199
      %p206 = scmp.eq.s32.totalorder %s42, 1
      %p207 = por %p205, %p206
      %p208 = scmp.ne.s32.totalorder %s199, %s200
      %p209 = scmp.eq.s32.totalorder %s42, 0
      %p210 = por %p208, %p209
      %p211 = scmp.ne.s32.totalorder %s199, %s200
      %p212 = scmp.eq.s32.totalorder %s43, 1
      %p213 = por %p211, %p212
      %p215 = scmp.ne.s32.totalorder %s200, %s214
      %p216 = scmp.eq.s32.totalorder %s43, 0
      %p217 = por %p215, %p216
      %s219 = sadd.s32 %s218, 1
      %p222 = scmp.eq.s32.totalorder %s37, 1
      %p223 = scmp.ne.s32.totalorder %s218, %s220
      %p224 = scmp.eq.s32.totalorder %s37, 0
      %p225 = por %p223, %p224
      %p226 = scmp.ne.s32.totalorder %s218, %s220
      %p227 = scmp.eq.s32.totalorder %s42, 1
      %p228 = por %p226, %p227
      %p229 = scmp.ne.s32.totalorder %s220, %s221
      %p230 = scmp.eq.s32.totalorder %s42, 0
      %p231 = por %p229, %p230
      %p232 = scmp.ne.s32.totalorder %s220, %s221
      %p233 = scmp.eq.s32.totalorder %s43, 1
      %p234 = por %p232, %p233
      %p236 = scmp.ne.s32.totalorder %s221, %s235
      %p237 = scmp.eq.s32.totalorder %s43, 0
      %p238 = por %p236, %p237
      %s240 = sadd.s32 %s239, 1
      %p243 = scmp.eq.s32.totalorder %s37, 1
      %p244 = scmp.ne.s32.totalorder %s239, %s241
      %p245 = scmp.eq.s32.totalorder %s37, 0
      %p246 = por %p244, %p245
      %p247 = scmp.ne.s32.totalorder %s239, %s241
      %p248 = scmp.eq.s32.totalorder %s42, 1
      %p249 = por %p247, %p248
      %p250 = scmp.ne.s32.totalorder %s241, %s242
      %p251 = scmp.eq.s32.totalorder %s42, 0
      %p252 = por %p250, %p251
      %p253 = scmp.ne.s32.totalorder %s241, %s242
      %p254 = scmp.eq.s32.totalorder %s43, 1
      %p255 = por %p253, %p254
      %p257 = scmp.ne.s32.totalorder %s242, %s256
      %p258 = scmp.eq.s32.totalorder %s43, 0
      %p259 = por %p257, %p258
      %s261 = sadd.s32 %s260, 1
      %p264 = scmp.eq.s32.totalorder %s37, 1
      %p265 = scmp.ne.s32.totalorder %s260, %s262
      %p266 = scmp.eq.s32.totalorder %s37, 0
      %p267 = por %p265, %p266
      %p268 = scmp.ne.s32.totalorder %s260, %s262
      %p269 = scmp.eq.s32.totalorder %s42, 1
      %p270 = por %p268, %p269
      %p271 = scmp.ne.s32.totalorder %s262, %s263
      %p272 = scmp.eq.s32.totalorder %s42, 0
      %p273 = por %p271, %p272
      %p274 = scmp.ne.s32.totalorder %s262, %s263
      %p275 = scmp.eq.s32.totalorder %s43, 1
      %p276 = por %p274, %p275
      %p278 = scmp.ne.s32.totalorder %s263, %s277
      %p279 = scmp.eq.s32.totalorder %s43, 0
      %p280 = por %p278, %p279
      %s282 = sadd.s32 %s281, 1
      %p285 = scmp.eq.s32.totalorder %s37, 1
      %p286 = scmp.ne.s32.totalorder %s281, %s283
      %p287 = scmp.eq.s32.totalorder %s37, 0
      %p288 = por %p286, %p287
      %p289 = scmp.ne.s32.totalorder %s281, %s283
      %p290 = scmp.eq.s32.totalorder %s42, 1
      %p291 = por %p289, %p290
      %p292 = scmp.ne.s32.totalorder %s283, %s284
      %p293 = scmp.eq.s32.totalorder %s42, 0
      %p294 = por %p292, %p293
      %p295 = scmp.ne.s32.totalorder %s283, %s284
      %p296 = scmp.eq.s32.totalorder %s43, 1
      %p297 = por %p295, %p296
      %p299 = scmp.ne.s32.totalorder %s284, %s298
      %p300 = scmp.eq.s32.totalorder %s43, 0
      %p301 = por %p299, %p300
      %s303 = sadd.s32 %s302, 1
      %p306 = scmp.eq.s32.totalorder %s37, 1
      %p307 = scmp.ne.s32.totalorder %s302, %s304
      %p308 = scmp.eq.s32.totalorder %s37, 0
      %p309 = por %p307, %p308
      %p310 = scmp.ne.s32.totalorder %s302, %s304
      %p311 = scmp.eq.s32.totalorder %s42, 1
      %p312 = por %p310, %p311
      %p313 = scmp.ne.s32.totalorder %s304, %s305
      %p314 = scmp.eq.s32.totalorder %s42, 0
      %p315 = por %p313, %p314
      %p316 = scmp.ne.s32.totalorder %s304, %s305
      %p317 = scmp.eq.s32.totalorder %s43, 1
      %p318 = por %p316, %p317
      %p320 = scmp.ne.s32.totalorder %s305, %s319
      %p321 = scmp.eq.s32.totalorder %s43, 0
      %p322 = por %p320, %p321
      %s324 = sadd.s32 %s323, 1
      %p327 = scmp.eq.s32.totalorder %s37, 1
      %p328 = scmp.ne.s32.totalorder %s323, %s325
      %p329 = scmp.eq.s32.totalorder %s37, 0
      %p330 = por %p328, %p329
      %p331 = scmp.ne.s32.totalorder %s323, %s325
      %p332 = scmp.eq.s32.totalorder %s42, 1
      %p333 = por %p331, %p332
      %p334 = scmp.ne.s32.totalorder %s325, %s326
      %p335 = scmp.eq.s32.totalorder %s42, 0
      %p336 = por %p334, %p335
      %p337 = scmp.ne.s32.totalorder %s325, %s326
      %p338 = scmp.eq.s32.totalorder %s43, 1
      %p339 = por %p337, %p338
      %p341 = scmp.ne.s32.totalorder %s326, %s340
      %p342 = scmp.eq.s32.totalorder %s43, 0
      %p343 = por %p341, %p342
      %s345 = sadd.s32 %s344, 1
      %p348 = scmp.eq.s32.totalorder %s37, 1
      %p349 = scmp.ne.s32.totalorder %s344, %s346
      %p350 = scmp.eq.s32.totalorder %s37, 0
      %p351 = por %p349, %p350
      %p352 = scmp.ne.s32.totalorder %s344, %s346
      %p353 = scmp.eq.s32.totalorder %s42, 1
      %p354 = por %p352, %p353
      %p355 = scmp.ne.s32.totalorder %s346, %s347
      %p356 = scmp.eq.s32.totalorder %s42, 0
      %p357 = por %p355, %p356
      %p358 = scmp.ne.s32.totalorder %s346, %s347
      %p359 = scmp.eq.s32.totalorder %s43, 1
      %p360 = por %p358, %p359
      %p362 = scmp.ne.s32.totalorder %s347, %s361
      %p363 = scmp.eq.s32.totalorder %s43, 0
      %p364 = por %p362, %p363
      %s366 = sadd.s32 %s365, 1
      %p369 = scmp.eq.s32.totalorder %s37, 1
      %p370 = scmp.ne.s32.totalorder %s365, %s367
      %p371 = scmp.eq.s32.totalorder %s37, 0
      %p372 = por %p370, %p371
      %p373 = scmp.ne.s32.totalorder %s365, %s367
      %p374 = scmp.eq.s32.totalorder %s42, 1
      %p375 = por %p373, %p374
      %p376 = scmp.ne.s32.totalorder %s367, %s368
      %p377 = scmp.eq.s32.totalorder %s42, 0
      %p378 = por %p376, %p377
      %p379 = scmp.ne.s32.totalorder %s367, %s368
      %p380 = scmp.eq.s32.totalorder %s43, 1
      %p381 = por %p379, %p380
      %p383 = scmp.ne.s32.totalorder %s368, %s382
      %p384 = scmp.eq.s32.totalorder %s43, 0
      %p385 = por %p383, %p384
      %s386 = ssub.s32 %s37, %s44
      %p387 = scmp.eq.s32.totalorder %s386, 0
      %s389 = sadd.s32 %s388, 1
      %s390 = scalar_select %p387, %s388, %s389
      %p393 = pneg %p387
      %p394 = scmp.eq.s32.totalorder %s37, 1
      %p395 = por %p393, %p394
      %p396 = scmp.ne.s32.totalorder %s388, %s391
      %p397 = scmp.eq.s32.totalorder %s37, 0
      %p398 = por %p396, %p397
      %p399 = scmp.ne.s32.totalorder %s388, %s391
      %p400 = scmp.eq.s32.totalorder %s42, 1
      %p401 = por %p399, %p400
      %p402 = scmp.ne.s32.totalorder %s391, %s392
      %p403 = scmp.eq.s32.totalorder %s42, 0
      %p404 = por %p402, %p403
      %p405 = scmp.ne.s32.totalorder %s391, %s392
      %p406 = scmp.eq.s32.totalorder %s43, 1
      %p407 = por %p405, %p406
      %p409 = scmp.ne.s32.totalorder %s392, %s408
      %p410 = scmp.eq.s32.totalorder %s43, 0
      %p411 = por %p409, %p410
      %s412 = ssub.s32 %s37, %s44
      %p413 = scmp.eq.s32.totalorder %s412, 0
      %s415 = sadd.s32 %s414, 1
      %s416 = scalar_select %p413, %s414, %s415
      %p419 = pneg %p413
      %p420 = scmp.eq.s32.totalorder %s37, 1
      %p421 = por %p419, %p420
      %p422 = scmp.ne.s32.totalorder %s414, %s417
      %p423 = scmp.eq.s32.totalorder %s37, 0
      %p424 = por %p422, %p423
      %p425 = scmp.ne.s32.totalorder %s414, %s417
      %p426 = scmp.eq.s32.totalorder %s42, 1
      %p427 = por %p425, %p426
      %p428 = scmp.ne.s32.totalorder %s417, %s418
      %p429 = scmp.eq.s32.totalorder %s42, 0
      %p430 = por %p428, %p429
      %p431 = scmp.ne.s32.totalorder %s417, %s418
      %p432 = scmp.eq.s32.totalorder %s43, 1
      %p433 = por %p431, %p432
      %p435 = scmp.ne.s32.totalorder %s418, %s434
      %p436 = scmp.eq.s32.totalorder %s43, 0
      %p437 = por %p435, %p436
      %s438 = ssub.s32 %s37, %s44
      %p439 = scmp.eq.s32.totalorder %s438, 0
      %s441 = sadd.s32 %s440, 1
      %s442 = scalar_select %p439, %s440, %s441
      %p445 = pneg %p439
      %p446 = scmp.eq.s32.totalorder %s37, 1
      %p447 = por %p445, %p446
      %p448 = scmp.ne.s32.totalorder %s440, %s443
      %p449 = scmp.eq.s32.totalorder %s37, 0
      %p450 = por %p448, %p449
      %p451 = scmp.ne.s32.totalorder %s440, %s443
      %p452 = scmp.eq.s32.totalorder %s42, 1
      %p453 = por %p451, %p452
      %p454 = scmp.ne.s32.totalorder %s443, %s444
      %p455 = scmp.eq.s32.totalorder %s42, 0
      %p456 = por %p454, %p455
      %p457 = scmp.ne.s32.totalorder %s443, %s444
      %p458 = scmp.eq.s32.totalorder %s43, 1
      %p459 = por %p457, %p458
      %p461 = scmp.ne.s32.totalorder %s444, %s460
      %p462 = scmp.eq.s32.totalorder %s43, 0
      %p463 = por %p461, %p462
      %p464 = scmp.le.s32.totalorder 1, %s37
      %p465 = scmp.lt.s32.totalorder %s37, 3
      %p466 = pnand %p464, %p465
      %p467 = pneg %p466
      // Predicated region
      $region9: #{tpu_custom_call.1} parent=5 // pred_check
        _
      $region10: #{tpu_custom_call.1} parent=5 // pred_check_branch
        %469 = sbr.rel (%p466) target = $region12
      $region11: #{tpu_custom_call.1} parent=5 // pred_region
        %s470 = ssub.s32 %s37, 1
        // Predicated region
        $region13: #{tpu_custom_call.1} parent=11 // pred_check
          %p471 = pneg %p84
        $region14: #{tpu_custom_call.1} parent=11 // pred_check_branch
          %473 = sbr.rel (%p471) target = $region16
        $region15: #{tpu_custom_call.1} parent=11 // pred_region
          %s475 = ssub.s32 768, 768
          %476 = vsyncadd [#allocation3], %s475
          %s477 = sshll.u32 [#allocation2], 4
          %s478 = int_to_ptr.vmem [resolvable:$true] %s477
          %483 = dma.hbm_to_vmem [thread:$0]  %s1, 768, %s478, [#allocation3], 64, 64, 4
        $region16: #{tpu_custom_call.1} parent=11 // pred_fallthru
          _
        // Predicated region
        $region17: #{tpu_custom_call.1} parent=11 // pred_check
          %p484 = pneg %p105
        $region18: #{tpu_custom_call.1} parent=11 // pred_check_branch
          %486 = sbr.rel (%p484) target = $region20
        $region19: #{tpu_custom_call.1} parent=11 // pred_region
          _
        $region20: #{tpu_custom_call.1} parent=11 // pred_fallthru
          _
        // Predicated region
        $region21: #{tpu_custom_call.1} parent=11 // pred_check
          %p487 = pneg %p126
        $region22: #{tpu_custom_call.1} parent=11 // pred_check_branch
          %489 = sbr.rel (%p487) target = $region24
        $region23: #{tpu_custom_call.1} parent=11 // pred_region
          %s491 = ssub.s32 1152, 1152
          %492 = vsyncadd [#allocation6], %s491
          %s493 = sshll.u32 [#allocation5], 4
          %s494 = int_to_ptr.vmem [resolvable:$true] %s493
          %499 = dma.hbm_to_vmem [thread:$0]  %s3, 1152, %s494, [#allocation6], 64, 64, 4
        $region24: #{tpu_custom_call.1} parent=11 // pred_fallthru
          _
        // Predicated region
        $region25: #{tpu_custom_call.1} parent=11 // pred_check
          %p500 = pneg %p147
        $region26: #{tpu_custom_call.1} parent=11 // pred_check_branch
          %502 = sbr.rel (%p500) target = $region28
        $region27: #{tpu_custom_call.1} parent=11 // pred_region
          %s504 = ssub.s32 16, 16
          %505 = vsyncadd [#allocation6], %s504
          %s507 = sshll.u32 [#allocation7], 4
          %s508 = int_to_ptr.vmem [resolvable:$true] %s507
          %510 = dma.hbm_to_vmem [thread:$0]  %s4, 16, %s508, [#allocation6]
        $region28: #{tpu_custom_call.1} parent=11 // pred_fallthru
          _
        // Predicated region
        $region29: #{tpu_custom_call.1} parent=11 // pred_check
          %p511 = pneg %p168
        $region30: #{tpu_custom_call.1} parent=11 // pred_check_branch
          %513 = sbr.rel (%p511) target = $region32
        $region31: #{tpu_custom_call.1} parent=11 // pred_region
          %s515 = ssub.s32 256, 256
          %516 = vsyncadd [#allocation9], %s515
          %s517 = sshll.u32 [#allocation8], 4
          %s518 = int_to_ptr.vmem [resolvable:$true] %s517
          %523 = dma.hbm_to_vmem [thread:$0]  %s5, 256, %s518, [#allocation9], 64, 64, 4
        $region32: #{tpu_custom_call.1} parent=11 // pred_fallthru
          _
        // Predicated region
        $region33: #{tpu_custom_call.1} parent=11 // pred_check
          %p524 = pneg %p189
        $region34: #{tpu_custom_call.1} parent=11 // pred_check_branch
          %526 = sbr.rel (%p524) target = $region36
        $region35: #{tpu_custom_call.1} parent=11 // pred_region
          %s528 = ssub.s32 16, 16
          %529 = vsyncadd [#allocation9], %s528
          %s531 = sshll.u32 [#allocation10], 4
          %s532 = int_to_ptr.vmem [resolvable:$true] %s531
          %534 = dma.hbm_to_vmem [thread:$0]  %s6, 16, %s532, [#allocation9]
        $region36: #{tpu_custom_call.1} parent=11 // pred_fallthru
          _
        // Predicated region
        $region37: #{tpu_custom_call.1} parent=11 // pred_check
          %p535 = pneg %p210
        $region38: #{tpu_custom_call.1} parent=11 // pred_check_branch
          %537 = sbr.rel (%p535) target = $region40
        $region39: #{tpu_custom_call.1} parent=11 // pred_region
          _
        $region40: #{tpu_custom_call.1} parent=11 // pred_fallthru
          _
        // Predicated region
        $region41: #{tpu_custom_call.1} parent=11 // pred_check
          %p538 = pneg %p231
        $region42: #{tpu_custom_call.1} parent=11 // pred_check_branch
          %540 = sbr.rel (%p538) target = $region44
        $region43: #{tpu_custom_call.1} parent=11 // pred_region
          %s542 = ssub.s32 16, 16
          %543 = vsyncadd [#allocation12], %s542
          %s545 = sshll.u32 [#allocation11], 4
          %s546 = int_to_ptr.vmem [resolvable:$true] %s545
          %548 = dma.hbm_to_vmem [thread:$0]  %s8, 16, %s546, [#allocation12]
        $region44: #{tpu_custom_call.1} parent=11 // pred_fallthru
          _
        // Predicated region
        $region45: #{tpu_custom_call.1} parent=11 // pred_check
          %p549 = pneg %p252
        $region46: #{tpu_custom_call.1} parent=11 // pred_check_branch
          %551 = sbr.rel (%p549) target = $region48
        $region47: #{tpu_custom_call.1} parent=11 // pred_region
          %s553 = ssub.s32 768, 768
          %554 = vsyncadd [#allocation12], %s553
          %s555 = sshll.u32 [#allocation13], 4
          %s556 = int_to_ptr.vmem [resolvable:$true] %s555
          %561 = dma.hbm_to_vmem [thread:$0]  %s9, 768, %s556, [#allocation12], 64, 64, 4
        $region48: #{tpu_custom_call.1} parent=11 // pred_fallthru
          _
        // Predicated region
        $region49: #{tpu_custom_call.1} parent=11 // pred_check
          %p562 = pneg %p273
        $region50: #{tpu_custom_call.1} parent=11 // pred_check_branch
          %564 = sbr.rel (%p562) target = $region52
        $region51: #{tpu_custom_call.1} parent=11 // pred_region
          %s566 = ssub.s32 16, 16
          %567 = vsyncadd [#allocation15], %s566
          %s569 = sshll.u32 [#allocation14], 4
          %s570 = int_to_ptr.vmem [resolvable:$true] %s569
          %572 = dma.hbm_to_vmem [thread:$0]  %s10, 16, %s570, [#allocation15]
        $region52: #{tpu_custom_call.1} parent=11 // pred_fallthru
          _
        // Predicated region
        $region53: #{tpu_custom_call.1} parent=11 // pred_check
          %p573 = pneg %p294
        $region54: #{tpu_custom_call.1} parent=11 // pred_check_branch
          %575 = sbr.rel (%p573) target = $region56
        $region55: #{tpu_custom_call.1} parent=11 // pred_region
          %s577 = ssub.s32 384, 384
          %578 = vsyncadd [#allocation15], %s577
          %s579 = sshll.u32 [#allocation16], 4
          %s580 = int_to_ptr.vmem [resolvable:$true] %s579
          %585 = dma.hbm_to_vmem [thread:$0]  %s11, 384, %s580, [#allocation15], 64, 64, 4
        $region56: #{tpu_custom_call.1} parent=11 // pred_fallthru
          _
        // Predicated region
        $region57: #{tpu_custom_call.1} parent=11 // pred_check
          %p586 = pneg %p315
        $region58: #{tpu_custom_call.1} parent=11 // pred_check_branch
          %588 = sbr.rel (%p586) target = $region60
        $region59: #{tpu_custom_call.1} parent=11 // pred_region
          %s590 = ssub.s32 16, 16
          %591 = vsyncadd [#allocation18], %s590
          %s593 = sshll.u32 [#allocation17], 4
          %s594 = int_to_ptr.vmem [resolvable:$true] %s593
          %596 = dma.hbm_to_vmem [thread:$0]  %s12, 16, %s594, [#allocation18]
        $region60: #{tpu_custom_call.1} parent=11 // pred_fallthru
          _
        // Predicated region
        $region61: #{tpu_custom_call.1} parent=11 // pred_check
          %p597 = pneg %p336
        $region62: #{tpu_custom_call.1} parent=11 // pred_check_branch
          %599 = sbr.rel (%p597) target = $region64
        $region63: #{tpu_custom_call.1} parent=11 // pred_region
          %s601 = ssub.s32 1024, 1024
          %602 = vsyncadd [#allocation18], %s601
          %s603 = sshll.u32 [#allocation19], 4
          %s604 = int_to_ptr.vmem [resolvable:$true] %s603
          %609 = dma.hbm_to_vmem [thread:$0]  %s13, 1024, %s604, [#allocation18], 64, 64, 4
        $region64: #{tpu_custom_call.1} parent=11 // pred_fallthru
          _
        // Predicated region
        $region65: #{tpu_custom_call.1} parent=11 // pred_check
          %p610 = pneg %p357
        $region66: #{tpu_custom_call.1} parent=11 // pred_check_branch
          %612 = sbr.rel (%p610) target = $region68
        $region67: #{tpu_custom_call.1} parent=11 // pred_region
          _
        $region68: #{tpu_custom_call.1} parent=11 // pred_fallthru
          _
        // Predicated region
        $region69: #{tpu_custom_call.1} parent=11 // pred_check
          %p613 = pneg %p378
        $region70: #{tpu_custom_call.1} parent=11 // pred_check_branch
          %615 = sbr.rel (%p613) target = $region72
        $region71: #{tpu_custom_call.1} parent=11 // pred_region
          _
        $region72: #{tpu_custom_call.1} parent=11 // pred_fallthru
          _
      $region12: #{tpu_custom_call.1} parent=5 // pred_fallthru
        _
      %p616 = scmp.lt.s32.totalorder %s37, 2
      // Predicated region
      $region73: #{tpu_custom_call.1} parent=5 // pred_check
        %p617 = pneg %p616
      $region74: #{tpu_custom_call.1} parent=5 // pred_check_branch
        %619 = sbr.rel (%p617) target = $region76
      $region75: #{tpu_custom_call.1} parent=5 // pred_region
        // Predicated region
        $region77: #{tpu_custom_call.1} parent=75 // pred_check
          %p620 = pneg %p57
        $region78: #{tpu_custom_call.1} parent=75 // pred_check_branch
          %622 = sbr.rel (%p620) target = $region80
        $region79: #{tpu_custom_call.1} parent=75 // pred_region
          %p623 = scmp.lt.s32.totalorder %s37, 1
          %s624 = scalar_select %p623, %s37, 1
          %s625 = smul.addr %s624, 2
          %s626 = smul.addr %s625, 4
          %s627 = scalar_lea.vmem %s0, %s626
        $region80: #{tpu_custom_call.1} parent=75 // pred_fallthru
          _
      $region76: #{tpu_custom_call.1} parent=5 // pred_fallthru
        _
      %p628 = scmp.le.s32.totalorder 1, %s37
      %p629 = scmp.lt.s32.totalorder %s37, 3
      %p630 = pnand %p628, %p629
      %p631 = pneg %p630
      // Predicated region
      $region81: #{tpu_custom_call.1} parent=5 // pred_check
        _
      $region82: #{tpu_custom_call.1} parent=5 // pred_check_branch
        %633 = sbr.rel (%p630) target = $region84
      $region83: #{tpu_custom_call.1} parent=5 // pred_region
        %s634 = ssub.s32 %s37, 1
        // Predicated region
        $region85: #{tpu_custom_call.1} parent=83 // pred_check
          %p635 = pneg %p84
        $region86: #{tpu_custom_call.1} parent=83 // pred_check_branch
          %637 = sbr.rel (%p635) target = $region88
        $region87: #{tpu_custom_call.1} parent=83 // pred_region
          %638 = dma.done [#allocation3], 768
        $region88: #{tpu_custom_call.1} parent=83 // pred_fallthru
          _
        // Predicated region
        $region89: #{tpu_custom_call.1} parent=83 // pred_check
          %p639 = pneg %p126
        $region90: #{tpu_custom_call.1} parent=83 // pred_check_branch
          %641 = sbr.rel (%p639) target = $region92
        $region91: #{tpu_custom_call.1} parent=83 // pred_region
          %642 = dma.done [#allocation6], 1152
        $region92: #{tpu_custom_call.1} parent=83 // pred_fallthru
          _
        // Predicated region
        $region93: #{tpu_custom_call.1} parent=83 // pred_check
          %p643 = pneg %p147
        $region94: #{tpu_custom_call.1} parent=83 // pred_check_branch
          %645 = sbr.rel (%p643) target = $region96
        $region95: #{tpu_custom_call.1} parent=83 // pred_region
          %646 = dma.done [#allocation6], 16
        $region96: #{tpu_custom_call.1} parent=83 // pred_fallthru
          _
        // Predicated region
        $region97: #{tpu_custom_call.1} parent=83 // pred_check
          %p647 = pneg %p168
        $region98: #{tpu_custom_call.1} parent=83 // pred_check_branch
          %649 = sbr.rel (%p647) target = $region100
        $region99: #{tpu_custom_call.1} parent=83 // pred_region
          %650 = dma.done [#allocation9], 256
        $region100: #{tpu_custom_call.1} parent=83 // pred_fallthru
          _
        // Predicated region
        $region101: #{tpu_custom_call.1} parent=83 // pred_check
          %p651 = pneg %p189
        $region102: #{tpu_custom_call.1} parent=83 // pred_check_branch
          %653 = sbr.rel (%p651) target = $region104
        $region103: #{tpu_custom_call.1} parent=83 // pred_region
          %654 = dma.done [#allocation9], 16
        $region104: #{tpu_custom_call.1} parent=83 // pred_fallthru
          _
        // Predicated region
        $region105: #{tpu_custom_call.1} parent=83 // pred_check
          %p655 = pneg %p231
        $region106: #{tpu_custom_call.1} parent=83 // pred_check_branch
          %657 = sbr.rel (%p655) target = $region108
        $region107: #{tpu_custom_call.1} parent=83 // pred_region
          %658 = dma.done [#allocation12], 16
        $region108: #{tpu_custom_call.1} parent=83 // pred_fallthru
          _
        // Predicated region
        $region109: #{tpu_custom_call.1} parent=83 // pred_check
          %p659 = pneg %p252
        $region110: #{tpu_custom_call.1} parent=83 // pred_check_branch
          %661 = sbr.rel (%p659) target = $region112
        $region111: #{tpu_custom_call.1} parent=83 // pred_region
          %662 = dma.done [#allocation12], 768
        $region112: #{tpu_custom_call.1} parent=83 // pred_fallthru
          _
        // Predicated region
        $region113: #{tpu_custom_call.1} parent=83 // pred_check
          %p663 = pneg %p273
        $region114: #{tpu_custom_call.1} parent=83 // pred_check_branch
          %665 = sbr.rel (%p663) target = $region116
        $region115: #{tpu_custom_call.1} parent=83 // pred_region
          %666 = dma.done [#allocation15], 16
        $region116: #{tpu_custom_call.1} parent=83 // pred_fallthru
          _
        // Predicated region
        $region117: #{tpu_custom_call.1} parent=83 // pred_check
          %p667 = pneg %p294
        $region118: #{tpu_custom_call.1} parent=83 // pred_check_branch
          %669 = sbr.rel (%p667) target = $region120
        $region119: #{tpu_custom_call.1} parent=83 // pred_region
          %670 = dma.done [#allocation15], 384
        $region120: #{tpu_custom_call.1} parent=83 // pred_fallthru
          _
        // Predicated region
        $region121: #{tpu_custom_call.1} parent=83 // pred_check
          %p671 = pneg %p315
        $region122: #{tpu_custom_call.1} parent=83 // pred_check_branch
          %673 = sbr.rel (%p671) target = $region124
        $region123: #{tpu_custom_call.1} parent=83 // pred_region
          %674 = dma.done [#allocation18], 16
        $region124: #{tpu_custom_call.1} parent=83 // pred_fallthru
          _
        // Predicated region
        $region125: #{tpu_custom_call.1} parent=83 // pred_check
          %p675 = pneg %p336
        $region126: #{tpu_custom_call.1} parent=83 // pred_check_branch
          %677 = sbr.rel (%p675) target = $region128
        $region127: #{tpu_custom_call.1} parent=83 // pred_region
          %678 = dma.done [#allocation18], 1024
        $region128: #{tpu_custom_call.1} parent=83 // pred_fallthru
          _
        %p679 = scmp.lt.s32.totalorder %s42, 1
        %s680 = scalar_select %p679, %s42, 1
        %s681 = smul.addr %s680, 2
        %s682 = smul.addr %s681, 4
        %s683 = scalar_lea.vmem %s0, %s682
        %p684 = pneg %p63
        %p685 = pneg %p60
        %p686 = pneg %p84
        %p687 = pneg %p81
        %p688 = pneg %p105
        %p689 = pneg %p102
        %p690 = pneg %p126
        %p691 = pneg %p123
        %p692 = pneg %p147
        %p693 = pneg %p144
        %p694 = pneg %p168
        %p695 = pneg %p165
        %p696 = pneg %p189
        %p697 = pneg %p186
        %p698 = pneg %p210
        %p699 = pneg %p207
        %p700 = pneg %p231
        %p701 = pneg %p228
        %p702 = pneg %p252
        %p703 = pneg %p249
        %p704 = pneg %p273
        %p705 = pneg %p270
        %p706 = pneg %p294
        %p707 = pneg %p291
        %p708 = pneg %p315
        %p709 = pneg %p312
        %p710 = pneg %p336
        %p711 = pneg %p333
        %p712 = pneg %p357
        %p713 = pneg %p354
        %p714 = pneg %p378
        %p715 = pneg %p375
        %p716 = pneg %p404
        %p717 = pneg %p401
        %s718 = sand.u32 %s391, 1
        %s719 = scalar_lea.sflag [#allocation4], %s718
        %s720 = sand.u32 %s391, 1
        %s721 = scalar_lea.vmem [#allocation20], %s720
        %p722 = pneg %p430
        %p723 = pneg %p427
        %s724 = sand.u32 %s42, 1
        %s725 = scalar_lea.sflag [#allocation22], %s724
        %s726 = sand.u32 %s417, 1
        %s727 = smul.addr %s726, 16
        %s728 = scalar_lea.vmem [#allocation21], %s727
        %p729 = pneg %p456
        %p730 = pneg %p453
        %s731 = sand.u32 %s42, 1
        %s732 = scalar_lea.sflag [#allocation22], %s731
        %s733 = sand.u32 %s443, 1
        %s734 = smul.addr %s733, 128
        %s735 = scalar_lea.vmem [#allocation23], %s734
        %p736 = scmp.lt.s32.totalorder %s42, 1
        %s737 = scalar_select %p736, %s42, 1
        %s738 = smul.addr %s737, 2
        %s739 = smul.addr %s738, 4
        %s740 = scalar_lea.vmem %s0, %s739
        %v742 = vld [vmem:[%s740] sm:$0xf]
        %v743 = vld [vmem:[%s740 + $0x4] sm:$0xf]
        %v744 = vunpack.c.l.bf16 %v742
        %v745 = vunpack.c.l.bf16 %v743
        %v746 = vrot.slane %v744, 7
        %v747 = vrot.slane %v745, 7
        %v748 = vlaneseq
        %v749 = vshrl.u32 %v748, 7
        %vm750 = vcmp.lt.s32.totalorder %v749, 1
        %v751 = vsel %vm750, %v746, %v747
        %v752 = vsel %vm750, %v747, %v746
        %v753 = vadd.s32 %v749, 8
        %vm754 = vcmp.ge.s32.totalorder %v749, 1
        %vm755 = vcmp.ge.s32.totalorder %v753, 1
        %vm756 = vcmp.lt.s32.totalorder %v749, 16
        %vm757 = vcmp.lt.s32.totalorder %v753, 16
        %vm758 = vmand %vm754, %vm756
        %vm759 = vmand %vm755, %vm757
        %v760 = vsel %vm758, %v752, 0.0
        %v761 = vsel %vm759, %v751, 0.0
        %v762 = vpack.c.bf16 %v761, %v760
        %v763 = vld [vmem:[#allocation2] sm:$0xf]
        %v764 = vld [vmem:[#allocation2 + $0x4] sm:$0xf]
        %v765 = vld [vmem:[#allocation2 + $0x8] sm:$0xf]
        %v766 = vld [vmem:[#allocation2 + $0xc] sm:$0xf]
        %s767 = scalar_lea.vmem [#allocation2], 16
        %v768 = vld [vmem:[%s767] sm:$0xf]
        %v769 = vld [vmem:[%s767 + $0x4] sm:$0xf]
        %v770 = vld [vmem:[%s767 + $0x8] sm:$0xf]
        %v771 = vld [vmem:[%s767 + $0xc] sm:$0xf]
        %v774 = vunpack.c.l.b16 %v742
        %v775 = vunpack.c.l.b16 %v743
        %v776 = vpack.c.b16 %v775, %v774
        %v781 = vunpack.c.l.b16 %v768
        %v782 = vunpack.c.l.b16 %v769
        %v783 = vunpack.c.l.b16 %v770
        %v784 = vunpack.c.l.b16 %v771
        %v785 = vpack.c.b16 %v782, %v781
        %v786 = vpack.c.b16 %v784, %v783
        %vm789 = vcmask 261120
        %v791 = vsel %vm789, %v776, 0
        %793 = vmatprep.subr.bf16.mxu0 0
        %794 = vmatpush1.bf16.msra.mxu0 0
        %795 = vmatprep.subr.bf16.mxu0 0
        %796 = vmatpush1.bf16.msra.mxu0 0
        %797 = vmatprep.subr.bf16.mxu0 0
        %798 = vmatpush1.bf16.msra.mxu0 0
        %799 = vmatprep.subr.bf16.mxu0 0
        %800 = vmatpush1.bf16.msra.mxu0 0
        %801 = vmatprep.subr.bf16.mxu0 0
        %802 = vmatpush1.bf16.msra.mxu0 0
        %803 = vmatprep.subr.bf16.mxu0 0
        %804 = vmatpush1.bf16.msra.mxu0 0
        %805 = vmatprep.subr.bf16.mxu0 0
        %806 = vmatpush1.bf16.msra.mxu0 %v786
        %807 = vmatprep.subr.bf16.mxu0 0
        %808 = vmatpush1.bf16.msra.mxu0 %v785
        %809 = vmatprep.subr.bf16.mxu0 0
        %810 = vmatpush2.bf16.msra.mxu0 0
        %811 = vmatprep.subr.bf16.mxu0 0
        %812 = vmatpush2.bf16.msra.mxu0 0
        %813 = vmatprep.subr.bf16.mxu0 0
        %814 = vmatpush2.bf16.msra.mxu0 0
        %815 = vmatprep.subr.bf16.mxu0 0
        %816 = vmatpush2.bf16.msra.mxu0 0
        %817 = vmatprep.subr.bf16.mxu0 0
        %818 = vmatpush2.bf16.msra.mxu0 0
        %819 = vmatprep.subr.bf16.mxu0 0
        %820 = vmatpush2.bf16.msra.mxu0 0
        %821 = vmatprep.subr.bf16.mxu0 0
        %822 = vmatpush2.bf16.msra.mxu0 0
        %823 = vmatprep.subr.bf16.mxu0 0
        %824 = vmatpush2.bf16.msra.mxu0 0
        %825 = vmatprep.mubr.bf16.mxu0 0
        %826 = vmatmul.mubr.bf16.gmra.mxu0 %v791
        %v827 = vpop.f32.mrf.mxu0
        %v828 = vadd.f32 0.0, %v827
        %v829 = vpop.f32.mrf.mxu0
        %v830 = vpop.f32.mrf.mxu0
        %v831 = vadd.f32 0.0, %v830
        %v832 = vpop.f32.mrf.mxu0
        %833 = vdwg.mxu0
        %v838 = vunpack.c.l.b16 %v763
        %v839 = vunpack.c.l.b16 %v764
        %v840 = vunpack.c.l.b16 %v765
        %v841 = vunpack.c.l.b16 %v766
        %v842 = vpack.c.b16 %v839, %v838
        %v843 = vpack.c.b16 %v841, %v840
        %v847 = vsel %vm789, %v762, 0
        %849 = vmatprep.subr.bf16.mxu0 0
        %850 = vmatpush1.bf16.msra.mxu0 0
        %851 = vmatprep.subr.bf16.mxu0 0
        %852 = vmatpush1.bf16.msra.mxu0 0
        %853 = vmatprep.subr.bf16.mxu0 0
        %854 = vmatpush1.bf16.msra.mxu0 0
        %855 = vmatprep.subr.bf16.mxu0 0
        %856 = vmatpush1.bf16.msra.mxu0 0
        %857 = vmatprep.subr.bf16.mxu0 0
        %858 = vmatpush1.bf16.msra.mxu0 0
        %859 = vmatprep.subr.bf16.mxu0 0
        %860 = vmatpush1.bf16.msra.mxu0 0
        %861 = vmatprep.subr.bf16.mxu0 0
        %862 = vmatpush1.bf16.msra.mxu0 %v843
        %863 = vmatprep.subr.bf16.mxu0 0
        %864 = vmatpush1.bf16.msra.mxu0 %v842
        %865 = vmatprep.subr.bf16.mxu0 0
        %866 = vmatpush2.bf16.msra.mxu0 0
        %867 = vmatprep.subr.bf16.mxu0 0
        %868 = vmatpush2.bf16.msra.mxu0 0
        %869 = vmatprep.subr.bf16.mxu0 0
        %870 = vmatpush2.bf16.msra.mxu0 0
        %871 = vmatprep.subr.bf16.mxu0 0
        %872 = vmatpush2.bf16.msra.mxu0 0
        %873 = vmatprep.subr.bf16.mxu0 0
        %874 = vmatpush2.bf16.msra.mxu0 0
        %875 = vmatprep.subr.bf16.mxu0 0
        %876 = vmatpush2.bf16.msra.mxu0 0
        %877 = vmatprep.subr.bf16.mxu0 0
        %878 = vmatpush2.bf16.msra.mxu0 0
        %879 = vmatprep.subr.bf16.mxu0 0
        %880 = vmatpush2.bf16.msra.mxu0 0
        %881 = vmatprep.mubr.bf16.mxu0 0
        %882 = vmatmul.mubr.bf16.gmra.mxu0 %v847
        %v883 = vpop.f32.mrf.mxu0
        %v884 = vadd.f32 %v828, %v883
        %v885 = vpop.f32.mrf.mxu0
        %v886 = vpop.f32.mrf.mxu0
        %v887 = vadd.f32 %v831, %v886
        %v888 = vpop.f32.mrf.mxu0
        %889 = vdwg.mxu0
        %v890 = vrot.slane %v744, 1
        %v891 = vrot.slane %v745, 1
        %vm892 = vcmp.lt.s32.totalorder %v749, 7
        %v893 = vsel %vm892, %v890, %v891
        %v894 = vsel %vm892, %v891, %v890
        %vm895 = vcmp.ge.s32.totalorder %v749, 0
        %vm896 = vcmp.ge.s32.totalorder %v753, 0
        %vm897 = vcmp.lt.s32.totalorder %v749, 15
        %vm898 = vcmp.lt.s32.totalorder %v753, 15
        %vm899 = vmand %vm895, %vm897
        %vm900 = vmand %vm896, %vm898
        %v901 = vsel %vm899, %v893, 0.0
        %v902 = vsel %vm900, %v894, 0.0
        %v903 = vpack.c.bf16 %v902, %v901
        %s904 = scalar_lea.vmem [#allocation2], 32
        %v905 = vld [vmem:[%s904] sm:$0xf]
        %v906 = vld [vmem:[%s904 + $0x4] sm:$0xf]
        %v907 = vld [vmem:[%s904 + $0x8] sm:$0xf]
        %v908 = vld [vmem:[%s904 + $0xc] sm:$0xf]
        %v913 = vunpack.c.l.b16 %v905
        %v914 = vunpack.c.l.b16 %v906
        %v915 = vunpack.c.l.b16 %v907
        %v916 = vunpack.c.l.b16 %v908
        %v917 = vpack.c.b16 %v914, %v913
        %v918 = vpack.c.b16 %v916, %v915
        %v922 = vsel %vm789, %v903, 0
        %924 = vmatprep.subr.bf16.mxu0 0
        %925 = vmatpush1.bf16.msra.mxu0 0
        %926 = vmatprep.subr.bf16.mxu0 0
        %927 = vmatpush1.bf16.msra.mxu0 0
        %928 = vmatprep.subr.bf16.mxu0 0
        %929 = vmatpush1.bf16.msra.mxu0 0
        %930 = vmatprep.subr.bf16.mxu0 0
        %931 = vmatpush1.bf16.msra.mxu0 0
        %932 = vmatprep.subr.bf16.mxu0 0
        %933 = vmatpush1.bf16.msra.mxu0 0
        %934 = vmatprep.subr.bf16.mxu0 0
        %935 = vmatpush1.bf16.msra.mxu0 0
        %936 = vmatprep.subr.bf16.mxu0 0
        %937 = vmatpush1.bf16.msra.mxu0 %v918
        %938 = vmatprep.subr.bf16.mxu0 0
        %939 = vmatpush1.bf16.msra.mxu0 %v917
        %940 = vmatprep.subr.bf16.mxu0 0
        %941 = vmatpush2.bf16.msra.mxu0 0
        %942 = vmatprep.subr.bf16.mxu0 0
        %943 = vmatpush2.bf16.msra.mxu0 0
        %944 = vmatprep.subr.bf16.mxu0 0
        %945 = vmatpush2.bf16.msra.mxu0 0
        %946 = vmatprep.subr.bf16.mxu0 0
        %947 = vmatpush2.bf16.msra.mxu0 0
        %948 = vmatprep.subr.bf16.mxu0 0
        %949 = vmatpush2.bf16.msra.mxu0 0
        %950 = vmatprep.subr.bf16.mxu0 0
        %951 = vmatpush2.bf16.msra.mxu0 0
        %952 = vmatprep.subr.bf16.mxu0 0
        %953 = vmatpush2.bf16.msra.mxu0 0
        %954 = vmatprep.subr.bf16.mxu0 0
        %955 = vmatpush2.bf16.msra.mxu0 0
        %956 = vmatprep.mubr.bf16.mxu0 0
        %957 = vmatmul.mubr.bf16.gmra.mxu0 %v922
        %v958 = vpop.f32.mrf.mxu0
        %v959 = vadd.f32 0.0, %v958
        %v960 = vpop.f32.mrf.mxu0
        %v961 = vpop.f32.mrf.mxu0
        %v962 = vadd.f32 0.0, %v961
        %v963 = vpop.f32.mrf.mxu0
        %964 = vdwg.mxu0
        %v965 = vadd.f32 %v884, %v959
        %v966 = vadd.f32 %v887, %v962
        %v967 = vld [vmem:[%s2] sm:$0x1]
        %v969 = vlaneseq
        %v970 = vshrl.u32 %v969, 7
        %v971 = vsub.s32 0, %v970
        %v972 = vrot.slane %v967, %v971
        %v974 = vadd.f32 %v965, %v972
        %v975 = vadd.f32 %v966, %v972
        %v976 = vtanh.pop %v974
        %v977 = vtanh.pop %v975
        %v978 = vrot.slane %v976, 7
        %v979 = vrot.slane %v977, 7
        %v980 = vsel %vm750, %v978, %v979
        %v981 = vsel %vm750, %v979, %v978
        %v982 = vsel %vm758, %v981, 0.0
        %v983 = vsel %vm759, %v980, 0.0
        %v984 = vpack.c.bf16 %v983, %v982
        %v985 = vld [vmem:[#allocation5] sm:$0xf]
        %v986 = vld [vmem:[#allocation5 + $0x4] sm:$0xf]
        %v987 = vld [vmem:[#allocation5 + $0x8] sm:$0xf]
        %v988 = vld [vmem:[#allocation5 + $0xc] sm:$0xf]
        %v989 = vld [vmem:[#allocation5 + $0x10] sm:$0xf]
        %v990 = vld [vmem:[#allocation5 + $0x14] sm:$0xf]
        %v991 = vpack.c.bf16 %v977, %v976
        %s992 = scalar_lea.vmem [#allocation5], 24
        %v993 = vld [vmem:[%s992] sm:$0xf]
        %v994 = vld [vmem:[%s992 + $0x4] sm:$0xf]
        %v995 = vld [vmem:[%s992 + $0x8] sm:$0xf]
        %v996 = vld [vmem:[%s992 + $0xc] sm:$0xf]
        %v997 = vld [vmem:[%s992 + $0x10] sm:$0xf]
        %v998 = vld [vmem:[%s992 + $0x14] sm:$0xf]
        %v1005 = vunpack.c.l.b16 %v993
        %v1006 = vunpack.c.l.b16 %v994
        %v1007 = vunpack.c.l.b16 %v995
        %v1008 = vunpack.c.l.b16 %v996
        %v1009 = vunpack.c.l.b16 %v997
        %v1010 = vunpack.c.l.b16 %v998
        %v1011 = vpack.c.b16 %v1006, %v1005
        %v1012 = vpack.c.b16 %v1008, %v1007
        %v1013 = vpack.c.b16 %v1010, %v1009
        %vm1017 = vcmask 392192
        %v1019 = vsel %vm1017, %v991, 0
        %1021 = vmatprep.subr.bf16.mxu0 0
        %1022 = vmatpush1.bf16.msra.mxu0 0
        %1023 = vmatprep.subr.bf16.mxu0 0
        %1024 = vmatpush1.bf16.msra.mxu0 0
        %1025 = vmatprep.subr.bf16.mxu0 0
        %1026 = vmatpush1.bf16.msra.mxu0 0
        %1027 = vmatprep.subr.bf16.mxu0 0
        %1028 = vmatpush1.bf16.msra.mxu0 0
        %1029 = vmatprep.subr.bf16.mxu0 0
        %1030 = vmatpush1.bf16.msra.mxu0 0
        %1031 = vmatprep.subr.bf16.mxu0 0
        %1032 = vmatpush1.bf16.msra.mxu0 %v1013
        %1033 = vmatprep.subr.bf16.mxu0 0
        %1034 = vmatpush1.bf16.msra.mxu0 %v1012
        %1035 = vmatprep.subr.bf16.mxu0 0
        %1036 = vmatpush1.bf16.msra.mxu0 %v1011
        %1037 = vmatprep.subr.bf16.mxu0 0
        %1038 = vmatpush2.bf16.msra.mxu0 0
        %1039 = vmatprep.subr.bf16.mxu0 0
        %1040 = vmatpush2.bf16.msra.mxu0 0
        %1041 = vmatprep.subr.bf16.mxu0 0
        %1042 = vmatpush2.bf16.msra.mxu0 0
        %1043 = vmatprep.subr.bf16.mxu0 0
        %1044 = vmatpush2.bf16.msra.mxu0 0
        %1045 = vmatprep.subr.bf16.mxu0 0
        %1046 = vmatpush2.bf16.msra.mxu0 0
        %1047 = vmatprep.subr.bf16.mxu0 0
        %1048 = vmatpush2.bf16.msra.mxu0 0
        %1049 = vmatprep.subr.bf16.mxu0 0
        %1050 = vmatpush2.bf16.msra.mxu0 0
        %1051 = vmatprep.subr.bf16.mxu0 0
        %1052 = vmatpush2.bf16.msra.mxu0 0
        %1053 = vmatprep.mubr.bf16.mxu0 0
        %1054 = vmatmul.mubr.bf16.gmra.mxu0 %v1019
        %v1055 = vpop.f32.mrf.mxu0
        %v1056 = vadd.f32 0.0, %v1055
        %v1057 = vpop.f32.mrf.mxu0
        %v1058 = vpop.f32.mrf.mxu0
        %v1059 = vadd.f32 0.0, %v1058
        %v1060 = vpop.f32.mrf.mxu0
        %1061 = vdwg.mxu0
        %v1068 = vunpack.c.l.b16 %v985
        %v1069 = vunpack.c.l.b16 %v986
        %v1070 = vunpack.c.l.b16 %v987
        %v1071 = vunpack.c.l.b16 %v988
        %v1072 = vunpack.c.l.b16 %v989
        %v1073 = vunpack.c.l.b16 %v990
        %v1074 = vpack.c.b16 %v1069, %v1068
        %v1075 = vpack.c.b16 %v1071, %v1070
        %v1076 = vpack.c.b16 %v1073, %v1072
        %v1081 = vsel %vm1017, %v984, 0
        %1083 = vmatprep.subr.bf16.mxu0 0
        %1084 = vmatpush1.bf16.msra.mxu0 0
        %1085 = vmatprep.subr.bf16.mxu0 0
        %1086 = vmatpush1.bf16.msra.mxu0 0
        %1087 = vmatprep.subr.bf16.mxu0 0
        %1088 = vmatpush1.bf16.msra.mxu0 0
        %1089 = vmatprep.subr.bf16.mxu0 0
        %1090 = vmatpush1.bf16.msra.mxu0 0
        %1091 = vmatprep.subr.bf16.mxu0 0
        %1092 = vmatpush1.bf16.msra.mxu0 0
        %1093 = vmatprep.subr.bf16.mxu0 0
        %1094 = vmatpush1.bf16.msra.mxu0 %v1076
        %1095 = vmatprep.subr.bf16.mxu0 0
        %1096 = vmatpush1.bf16.msra.mxu0 %v1075
        %1097 = vmatprep.subr.bf16.mxu0 0
        %1098 = vmatpush1.bf16.msra.mxu0 %v1074
        %1099 = vmatprep.subr.bf16.mxu0 0
        %1100 = vmatpush2.bf16.msra.mxu0 0
        %1101 = vmatprep.subr.bf16.mxu0 0
        %1102 = vmatpush2.bf16.msra.mxu0 0
        %1103 = vmatprep.subr.bf16.mxu0 0
        %1104 = vmatpush2.bf16.msra.mxu0 0
        %1105 = vmatprep.subr.bf16.mxu0 0
        %1106 = vmatpush2.bf16.msra.mxu0 0
        %1107 = vmatprep.subr.bf16.mxu0 0
        %1108 = vmatpush2.bf16.msra.mxu0 0
        %1109 = vmatprep.subr.bf16.mxu0 0
        %1110 = vmatpush2.bf16.msra.mxu0 0
        %1111 = vmatprep.subr.bf16.mxu0 0
        %1112 = vmatpush2.bf16.msra.mxu0 0
        %1113 = vmatprep.subr.bf16.mxu0 0
        %1114 = vmatpush2.bf16.msra.mxu0 0
        %1115 = vmatprep.mubr.bf16.mxu0 0
        %1116 = vmatmul.mubr.bf16.gmra.mxu0 %v1081
        %v1117 = vpop.f32.mrf.mxu0
        %v1118 = vadd.f32 %v1056, %v1117
        %v1119 = vpop.f32.mrf.mxu0
        %v1120 = vpop.f32.mrf.mxu0
        %v1121 = vadd.f32 %v1059, %v1120
        %v1122 = vpop.f32.mrf.mxu0
        %1123 = vdwg.mxu0
        %v1124 = vrot.slane %v976, 1
        %v1125 = vrot.slane %v977, 1
        %v1126 = vsel %vm892, %v1124, %v1125
        %v1127 = vsel %vm892, %v1125, %v1124
        %v1128 = vsel %vm899, %v1126, 0.0
        %v1129 = vsel %vm900, %v1127, 0.0
        %v1130 = vpack.c.bf16 %v1129, %v1128
        %s1131 = scalar_lea.vmem [#allocation5], 48
        %v1132 = vld [vmem:[%s1131] sm:$0xf]
        %v1133 = vld [vmem:[%s1131 + $0x4] sm:$0xf]
        %v1134 = vld [vmem:[%s1131 + $0x8] sm:$0xf]
        %v1135 = vld [vmem:[%s1131 + $0xc] sm:$0xf]
        %v1136 = vld [vmem:[%s1131 + $0x10] sm:$0xf]
        %v1137 = vld [vmem:[%s1131 + $0x14] sm:$0xf]
        %v1144 = vunpack.c.l.b16 %v1132
        %v1145 = vunpack.c.l.b16 %v1133
        %v1146 = vunpack.c.l.b16 %v1134
        %v1147 = vunpack.c.l.b16 %v1135
        %v1148 = vunpack.c.l.b16 %v1136
        %v1149 = vunpack.c.l.b16 %v1137
        %v1150 = vpack.c.b16 %v1145, %v1144
        %v1151 = vpack.c.b16 %v1147, %v1146
        %v1152 = vpack.c.b16 %v1149, %v1148
        %v1157 = vsel %vm1017, %v1130, 0
        %1159 = vmatprep.subr.bf16.mxu0 0
        %1160 = vmatpush1.bf16.msra.mxu0 0
        %1161 = vmatprep.subr.bf16.mxu0 0
        %1162 = vmatpush1.bf16.msra.mxu0 0
        %1163 = vmatprep.subr.bf16.mxu0 0
        %1164 = vmatpush1.bf16.msra.mxu0 0
        %1165 = vmatprep.subr.bf16.mxu0 0
        %1166 = vmatpush1.bf16.msra.mxu0 0
        %1167 = vmatprep.subr.bf16.mxu0 0
        %1168 = vmatpush1.bf16.msra.mxu0 0
        %1169 = vmatprep.subr.bf16.mxu0 0
        %1170 = vmatpush1.bf16.msra.mxu0 %v1152
        %1171 = vmatprep.subr.bf16.mxu0 0
        %1172 = vmatpush1.bf16.msra.mxu0 %v1151
        %1173 = vmatprep.subr.bf16.mxu0 0
        %1174 = vmatpush1.bf16.msra.mxu0 %v1150
        %1175 = vmatprep.subr.bf16.mxu0 0
        %1176 = vmatpush2.bf16.msra.mxu0 0
        %1177 = vmatprep.subr.bf16.mxu0 0
        %1178 = vmatpush2.bf16.msra.mxu0 0
        %1179 = vmatprep.subr.bf16.mxu0 0
        %1180 = vmatpush2.bf16.msra.mxu0 0
        %1181 = vmatprep.subr.bf16.mxu0 0
        %1182 = vmatpush2.bf16.msra.mxu0 0
        %1183 = vmatprep.subr.bf16.mxu0 0
        %1184 = vmatpush2.bf16.msra.mxu0 0
        %1185 = vmatprep.subr.bf16.mxu0 0
        %1186 = vmatpush2.bf16.msra.mxu0 0
        %1187 = vmatprep.subr.bf16.mxu0 0
        %1188 = vmatpush2.bf16.msra.mxu0 0
        %1189 = vmatprep.subr.bf16.mxu0 0
        %1190 = vmatpush2.bf16.msra.mxu0 0
        %1191 = vmatprep.mubr.bf16.mxu0 0
        %1192 = vmatmul.mubr.bf16.gmra.mxu0 %v1157
        %v1193 = vpop.f32.mrf.mxu0
        %v1194 = vadd.f32 0.0, %v1193
        %v1195 = vpop.f32.mrf.mxu0
        %v1196 = vpop.f32.mrf.mxu0
        %v1197 = vadd.f32 0.0, %v1196
        %v1198 = vpop.f32.mrf.mxu0
        %1199 = vdwg.mxu0
        %v1200 = vadd.f32 %v1118, %v1194
        %v1201 = vadd.f32 %v1121, %v1197
        %v1202 = vld [vmem:[#allocation7] sm:$0x1]
        %v1204 = vlaneseq
        %v1205 = vshrl.u32 %v1204, 7
        %v1206 = vsub.s32 0, %v1205
        %v1207 = vrot.slane %v1202, %v1206
        %v1209 = vadd.f32 %v1200, %v1207
        %v1210 = vadd.f32 %v1201, %v1207
        %v1211 = vld [vmem:[#allocation8] sm:$0xf]
        %v1212 = vld [vmem:[#allocation8 + $0x4] sm:$0xf]
        %v1213 = vld [vmem:[#allocation8 + $0x8] sm:$0xf]
        %v1214 = vld [vmem:[#allocation8 + $0xc] sm:$0xf]
        %v1215 = vld [vmem:[#allocation10] sm:$0x1]
        %v1217 = vlaneseq
        %v1218 = vshrl.u32 %v1217, 7
        %v1219 = vsub.s32 0, %v1218
        %v1220 = vrot.slane %v1215, %v1219
        %v1226 = vunpack.c.l.b16 %v1211
        %v1227 = vunpack.c.l.b16 %v1212
        %v1228 = vunpack.c.l.b16 %v1213
        %v1229 = vunpack.c.l.b16 %v1214
        %v1230 = vpack.c.b16 %v1227, %v1226
        %v1231 = vpack.c.b16 %v1229, %v1228
        %1234 = vmatprep.subr.bf16.mxu0 0
        %1235 = vmatpush1.bf16.msra.mxu0 0
        %1236 = vmatprep.subr.bf16.mxu0 0
        %1237 = vmatpush1.bf16.msra.mxu0 0
        %1238 = vmatprep.subr.bf16.mxu0 0
        %1239 = vmatpush1.bf16.msra.mxu0 0
        %1240 = vmatprep.subr.bf16.mxu0 0
        %1241 = vmatpush1.bf16.msra.mxu0 0
        %1242 = vmatprep.subr.bf16.mxu0 0
        %1243 = vmatpush1.bf16.msra.mxu0 0
        %1244 = vmatprep.subr.bf16.mxu0 0
        %1245 = vmatpush1.bf16.msra.mxu0 0
        %1246 = vmatprep.subr.bf16.mxu0 0
        %1247 = vmatpush1.bf16.msra.mxu0 %v1231
        %1248 = vmatprep.subr.bf16.mxu0 0
        %1249 = vmatpush1.bf16.msra.mxu0 %v1230
        %1250 = vmatprep.subr.bf16.mxu0 0
        %1251 = vmatpush2.bf16.msra.mxu0 0
        %1252 = vmatprep.subr.bf16.mxu0 0
        %1253 = vmatpush2.bf16.msra.mxu0 0
        %1254 = vmatprep.subr.bf16.mxu0 0
        %1255 = vmatpush2.bf16.msra.mxu0 0
        %1256 = vmatprep.subr.bf16.mxu0 0
        %1257 = vmatpush2.bf16.msra.mxu0 0
        %1258 = vmatprep.subr.bf16.mxu0 0
        %1259 = vmatpush2.bf16.msra.mxu0 0
        %1260 = vmatprep.subr.bf16.mxu0 0
        %1261 = vmatpush2.bf16.msra.mxu0 0
        %1262 = vmatprep.subr.bf16.mxu0 0
        %1263 = vmatpush2.bf16.msra.mxu0 0
        %1264 = vmatprep.subr.bf16.mxu0 0
        %1265 = vmatpush2.bf16.msra.mxu0 0
        %1266 = vmatprep.mubr.bf16.mxu0 0
        %1267 = vmatmul.mubr.bf16.gmra.mxu0 %v791
        %v1268 = vpop.f32.mrf.mxu0
        %v1269 = vadd.f32 %v1220, %v1268
        %v1270 = vpop.f32.mrf.mxu0
        %v1271 = vpop.f32.mrf.mxu0
        %v1272 = vadd.f32 %v1220, %v1271
        %v1273 = vpop.f32.mrf.mxu0
        %1274 = vdwg.mxu0
        %v1275 = vadd.f32 %v1209, %v1269
        %v1276 = vadd.f32 %v1210, %v1272
        %v1277 = vtanh.pop %v1275
        %v1278 = vtanh.pop %v1276
        %v1279 = vrot.slane %v1277, 7
        %v1280 = vrot.slane %v1278, 7
        %v1281 = vsel %vm750, %v1279, %v1280
        %v1282 = vsel %vm750, %v1280, %v1279
        %v1283 = vsel %vm758, %v1282, 0.0
        %v1284 = vsel %vm759, %v1281, 0.0
        %v1285 = vpack.c.bf16 %v1284, %v1283
        %v1286 = vld [vmem:[%s7] sm:$0xf]
        %v1287 = vld [vmem:[%s7 + $0x4] sm:$0xf]
        %v1288 = vld [vmem:[%s7 + $0x8] sm:$0xf]
        %v1289 = vld [vmem:[%s7 + $0xc] sm:$0xf]
        %v1290 = vld [vmem:[%s7 + $0x10] sm:$0xf]
        %v1291 = vld [vmem:[%s7 + $0x14] sm:$0xf]
        %v1292 = vpack.c.bf16 %v1278, %v1277
        %s1293 = scalar_lea.vmem %s7, 24
        %v1294 = vld [vmem:[%s1293] sm:$0xf]
        %v1295 = vld [vmem:[%s1293 + $0x4] sm:$0xf]
        %v1296 = vld [vmem:[%s1293 + $0x8] sm:$0xf]
        %v1297 = vld [vmem:[%s1293 + $0xc] sm:$0xf]
        %v1298 = vld [vmem:[%s1293 + $0x10] sm:$0xf]
        %v1299 = vld [vmem:[%s1293 + $0x14] sm:$0xf]
        %v1306 = vunpack.c.l.b16 %v1294
        %v1307 = vunpack.c.l.b16 %v1295
        %v1308 = vunpack.c.l.b16 %v1296
        %v1309 = vunpack.c.l.b16 %v1297
        %v1310 = vunpack.c.l.b16 %v1298
        %v1311 = vunpack.c.l.b16 %v1299
        %v1312 = vpack.c.b16 %v1307, %v1306
        %v1313 = vpack.c.b16 %v1309, %v1308
        %v1314 = vpack.c.b16 %v1311, %v1310
        %v1319 = vsel %vm1017, %v1292, 0
        %1321 = vmatprep.subr.bf16.mxu0 0
        %1322 = vmatpush1.bf16.msra.mxu0 0
        %1323 = vmatprep.subr.bf16.mxu0 0
        %1324 = vmatpush1.bf16.msra.mxu0 0
        %1325 = vmatprep.subr.bf16.mxu0 0
        %1326 = vmatpush1.bf16.msra.mxu0 0
        %1327 = vmatprep.subr.bf16.mxu0 0
        %1328 = vmatpush1.bf16.msra.mxu0 0
        %1329 = vmatprep.subr.bf16.mxu0 0
        %1330 = vmatpush1.bf16.msra.mxu0 0
        %1331 = vmatprep.subr.bf16.mxu0 0
        %1332 = vmatpush1.bf16.msra.mxu0 %v1314
        %1333 = vmatprep.subr.bf16.mxu0 0
        %1334 = vmatpush1.bf16.msra.mxu0 %v1313
        %1335 = vmatprep.subr.bf16.mxu0 0
        %1336 = vmatpush1.bf16.msra.mxu0 %v1312
        %1337 = vmatprep.subr.bf16.mxu0 0
        %1338 = vmatpush2.bf16.msra.mxu0 0
        %1339 = vmatprep.subr.bf16.mxu0 0
        %1340 = vmatpush2.bf16.msra.mxu0 0
        %1341 = vmatprep.subr.bf16.mxu0 0
        %1342 = vmatpush2.bf16.msra.mxu0 0
        %1343 = vmatprep.subr.bf16.mxu0 0
        %1344 = vmatpush2.bf16.msra.mxu0 0
        %1345 = vmatprep.subr.bf16.mxu0 0
        %1346 = vmatpush2.bf16.msra.mxu0 0
        %1347 = vmatprep.subr.bf16.mxu0 0
        %1348 = vmatpush2.bf16.msra.mxu0 0
        %1349 = vmatprep.subr.bf16.mxu0 0
        %1350 = vmatpush2.bf16.msra.mxu0 0
        %1351 = vmatprep.subr.bf16.mxu0 0
        %1352 = vmatpush2.bf16.msra.mxu0 0
        %1353 = vmatprep.mubr.bf16.mxu0 0
        %1354 = vmatmul.mubr.bf16.gmra.mxu0 %v1319
        %v1355 = vpop.f32.mrf.mxu0
        %v1356 = vadd.f32 0.0, %v1355
        %v1357 = vpop.f32.mrf.mxu0
        %v1358 = vpop.f32.mrf.mxu0
        %v1359 = vadd.f32 0.0, %v1358
        %v1360 = vpop.f32.mrf.mxu0
        %1361 = vdwg.mxu0
        %v1368 = vunpack.c.l.b16 %v1286
        %v1369 = vunpack.c.l.b16 %v1287
        %v1370 = vunpack.c.l.b16 %v1288
        %v1371 = vunpack.c.l.b16 %v1289
        %v1372 = vunpack.c.l.b16 %v1290
        %v1373 = vunpack.c.l.b16 %v1291
        %v1374 = vpack.c.b16 %v1369, %v1368
        %v1375 = vpack.c.b16 %v1371, %v1370
        %v1376 = vpack.c.b16 %v1373, %v1372
        %v1381 = vsel %vm1017, %v1285, 0
        %1383 = vmatprep.subr.bf16.mxu0 0
        %1384 = vmatpush1.bf16.msra.mxu0 0
        %1385 = vmatprep.subr.bf16.mxu0 0
        %1386 = vmatpush1.bf16.msra.mxu0 0
        %1387 = vmatprep.subr.bf16.mxu0 0
        %1388 = vmatpush1.bf16.msra.mxu0 0
        %1389 = vmatprep.subr.bf16.mxu0 0
        %1390 = vmatpush1.bf16.msra.mxu0 0
        %1391 = vmatprep.subr.bf16.mxu0 0
        %1392 = vmatpush1.bf16.msra.mxu0 0
        %1393 = vmatprep.subr.bf16.mxu0 0
        %1394 = vmatpush1.bf16.msra.mxu0 %v1376
        %1395 = vmatprep.subr.bf16.mxu0 0
        %1396 = vmatpush1.bf16.msra.mxu0 %v1375
        %1397 = vmatprep.subr.bf16.mxu0 0
        %1398 = vmatpush1.bf16.msra.mxu0 %v1374
        %1399 = vmatprep.subr.bf16.mxu0 0
        %1400 = vmatpush2.bf16.msra.mxu0 0
        %1401 = vmatprep.subr.bf16.mxu0 0
        %1402 = vmatpush2.bf16.msra.mxu0 0
        %1403 = vmatprep.subr.bf16.mxu0 0
        %1404 = vmatpush2.bf16.msra.mxu0 0
        %1405 = vmatprep.subr.bf16.mxu0 0
        %1406 = vmatpush2.bf16.msra.mxu0 0
        %1407 = vmatprep.subr.bf16.mxu0 0
        %1408 = vmatpush2.bf16.msra.mxu0 0
        %1409 = vmatprep.subr.bf16.mxu0 0
        %1410 = vmatpush2.bf16.msra.mxu0 0
        %1411 = vmatprep.subr.bf16.mxu0 0
        %1412 = vmatpush2.bf16.msra.mxu0 0
        %1413 = vmatprep.subr.bf16.mxu0 0
        %1414 = vmatpush2.bf16.msra.mxu0 0
        %1415 = vmatprep.mubr.bf16.mxu0 0
        %1416 = vmatmul.mubr.bf16.gmra.mxu0 %v1381
        %v1417 = vpop.f32.mrf.mxu0
        %v1418 = vadd.f32 %v1356, %v1417
        %v1419 = vpop.f32.mrf.mxu0
        %v1420 = vpop.f32.mrf.mxu0
        %v1421 = vadd.f32 %v1359, %v1420
        %v1422 = vpop.f32.mrf.mxu0
        %1423 = vdwg.mxu0
        %v1424 = vrot.slane %v1277, 1
        %v1425 = vrot.slane %v1278, 1
        %v1426 = vsel %vm892, %v1424, %v1425
        %v1427 = vsel %vm892, %v1425, %v1424
        %v1428 = vsel %vm899, %v1426, 0.0
        %v1429 = vsel %vm900, %v1427, 0.0
        %v1430 = vpack.c.bf16 %v1429, %v1428
        %s1431 = scalar_lea.vmem %s7, 48
        %v1432 = vld [vmem:[%s1431] sm:$0xf]
        %v1433 = vld [vmem:[%s1431 + $0x4] sm:$0xf]
        %v1434 = vld [vmem:[%s1431 + $0x8] sm:$0xf]
        %v1435 = vld [vmem:[%s1431 + $0xc] sm:$0xf]
        %v1436 = vld [vmem:[%s1431 + $0x10] sm:$0xf]
        %v1437 = vld [vmem:[%s1431 + $0x14] sm:$0xf]
        %v1444 = vunpack.c.l.b16 %v1432
        %v1445 = vunpack.c.l.b16 %v1433
        %v1446 = vunpack.c.l.b16 %v1434
        %v1447 = vunpack.c.l.b16 %v1435
        %v1448 = vunpack.c.l.b16 %v1436
        %v1449 = vunpack.c.l.b16 %v1437
        %v1450 = vpack.c.b16 %v1445, %v1444
        %v1451 = vpack.c.b16 %v1447, %v1446
        %v1452 = vpack.c.b16 %v1449, %v1448
        %v1457 = vsel %vm1017, %v1430, 0
        %1459 = vmatprep.subr.bf16.mxu0 0
        %1460 = vmatpush1.bf16.msra.mxu0 0
        %1461 = vmatprep.subr.bf16.mxu0 0
        %1462 = vmatpush1.bf16.msra.mxu0 0
        %1463 = vmatprep.subr.bf16.mxu0 0
        %1464 = vmatpush1.bf16.msra.mxu0 0
        %1465 = vmatprep.subr.bf16.mxu0 0
        %1466 = vmatpush1.bf16.msra.mxu0 0
        %1467 = vmatprep.subr.bf16.mxu0 0
        %1468 = vmatpush1.bf16.msra.mxu0 0
        %1469 = vmatprep.subr.bf16.mxu0 0
        %1470 = vmatpush1.bf16.msra.mxu0 %v1452
        %1471 = vmatprep.subr.bf16.mxu0 0
        %1472 = vmatpush1.bf16.msra.mxu0 %v1451
        %1473 = vmatprep.subr.bf16.mxu0 0
        %1474 = vmatpush1.bf16.msra.mxu0 %v1450
        %1475 = vmatprep.subr.bf16.mxu0 0
        %1476 = vmatpush2.bf16.msra.mxu0 0
        %1477 = vmatprep.subr.bf16.mxu0 0
        %1478 = vmatpush2.bf16.msra.mxu0 0
        %1479 = vmatprep.subr.bf16.mxu0 0
        %1480 = vmatpush2.bf16.msra.mxu0 0
        %1481 = vmatprep.subr.bf16.mxu0 0
        %1482 = vmatpush2.bf16.msra.mxu0 0
        %1483 = vmatprep.subr.bf16.mxu0 0
        %1484 = vmatpush2.bf16.msra.mxu0 0
        %1485 = vmatprep.subr.bf16.mxu0 0
        %1486 = vmatpush2.bf16.msra.mxu0 0
        %1487 = vmatprep.subr.bf16.mxu0 0
        %1488 = vmatpush2.bf16.msra.mxu0 0
        %1489 = vmatprep.subr.bf16.mxu0 0
        %1490 = vmatpush2.bf16.msra.mxu0 0
        %1491 = vmatprep.mubr.bf16.mxu0 0
        %1492 = vmatmul.mubr.bf16.gmra.mxu0 %v1457
        %v1493 = vpop.f32.mrf.mxu0
        %v1494 = vadd.f32 0.0, %v1493
        %v1495 = vpop.f32.mrf.mxu0
        %v1496 = vpop.f32.mrf.mxu0
        %v1497 = vadd.f32 0.0, %v1496
        %v1498 = vpop.f32.mrf.mxu0
        %1499 = vdwg.mxu0
        %v1500 = vadd.f32 %v1418, %v1494
        %v1501 = vadd.f32 %v1421, %v1497
        %v1502 = vld [vmem:[#allocation11] sm:$0x1]
        %v1504 = vlaneseq
        %v1505 = vshrl.u32 %v1504, 7
        %v1506 = vsub.s32 0, %v1505
        %v1507 = vrot.slane %v1502, %v1506
        %v1509 = vadd.f32 %v1500, %v1507
        %v1510 = vadd.f32 %v1501, %v1507
        %v1511 = vtanh.pop %v1509
        %v1512 = vtanh.pop %v1510
        %v1513 = vrot.slane %v1511, 7
        %v1514 = vrot.slane %v1512, 7
        %v1515 = vsel %vm750, %v1513, %v1514
        %v1516 = vsel %vm750, %v1514, %v1513
        %v1517 = vsel %vm758, %v1516, 0.0
        %v1518 = vsel %vm759, %v1515, 0.0
        %v1519 = vpack.c.bf16 %v1518, %v1517
        %v1520 = vld [vmem:[#allocation13] sm:$0xf]
        %v1521 = vld [vmem:[#allocation13 + $0x4] sm:$0xf]
        %v1522 = vld [vmem:[#allocation13 + $0x8] sm:$0xf]
        %v1523 = vld [vmem:[#allocation13 + $0xc] sm:$0xf]
        %v1524 = vpack.c.bf16 %v1512, %v1511
        %s1525 = scalar_lea.vmem [#allocation13], 16
        %v1526 = vld [vmem:[%s1525] sm:$0xf]
        %v1527 = vld [vmem:[%s1525 + $0x4] sm:$0xf]
        %v1528 = vld [vmem:[%s1525 + $0x8] sm:$0xf]
        %v1529 = vld [vmem:[%s1525 + $0xc] sm:$0xf]
        %v1534 = vunpack.c.l.b16 %v1526
        %v1535 = vunpack.c.l.b16 %v1527
        %v1536 = vunpack.c.l.b16 %v1528
        %v1537 = vunpack.c.l.b16 %v1529
        %v1538 = vpack.c.b16 %v1535, %v1534
        %v1539 = vpack.c.b16 %v1537, %v1536
        %v1543 = vsel %vm789, %v1524, 0
        %1545 = vmatprep.subr.bf16.mxu0 0
        %1546 = vmatpush1.bf16.msra.mxu0 0
        %1547 = vmatprep.subr.bf16.mxu0 0
        %1548 = vmatpush1.bf16.msra.mxu0 0
        %1549 = vmatprep.subr.bf16.mxu0 0
        %1550 = vmatpush1.bf16.msra.mxu0 0
        %1551 = vmatprep.subr.bf16.mxu0 0
        %1552 = vmatpush1.bf16.msra.mxu0 0
        %1553 = vmatprep.subr.bf16.mxu0 0
        %1554 = vmatpush1.bf16.msra.mxu0 0
        %1555 = vmatprep.subr.bf16.mxu0 0
        %1556 = vmatpush1.bf16.msra.mxu0 0
        %1557 = vmatprep.subr.bf16.mxu0 0
        %1558 = vmatpush1.bf16.msra.mxu0 %v1539
        %1559 = vmatprep.subr.bf16.mxu0 0
        %1560 = vmatpush1.bf16.msra.mxu0 %v1538
        %1561 = vmatprep.subr.bf16.mxu0 0
        %1562 = vmatpush2.bf16.msra.mxu0 0
        %1563 = vmatprep.subr.bf16.mxu0 0
        %1564 = vmatpush2.bf16.msra.mxu0 0
        %1565 = vmatprep.subr.bf16.mxu0 0
        %1566 = vmatpush2.bf16.msra.mxu0 0
        %1567 = vmatprep.subr.bf16.mxu0 0
        %1568 = vmatpush2.bf16.msra.mxu0 0
        %1569 = vmatprep.subr.bf16.mxu0 0
        %1570 = vmatpush2.bf16.msra.mxu0 0
        %1571 = vmatprep.subr.bf16.mxu0 0
        %1572 = vmatpush2.bf16.msra.mxu0 0
        %1573 = vmatprep.subr.bf16.mxu0 0
        %1574 = vmatpush2.bf16.msra.mxu0 0
        %1575 = vmatprep.subr.bf16.mxu0 0
        %1576 = vmatpush2.bf16.msra.mxu0 0
        %1577 = vmatprep.mubr.bf16.mxu0 0
        %1578 = vmatmul.mubr.bf16.gmra.mxu0 %v1543
        %v1579 = vpop.f32.mrf.mxu0
        %v1580 = vadd.f32 0.0, %v1579
        %v1581 = vpop.f32.mrf.mxu0
        %v1582 = vpop.f32.mrf.mxu0
        %v1583 = vadd.f32 0.0, %v1582
        %v1584 = vpop.f32.mrf.mxu0
        %1585 = vdwg.mxu0
        %v1590 = vunpack.c.l.b16 %v1520
        %v1591 = vunpack.c.l.b16 %v1521
        %v1592 = vunpack.c.l.b16 %v1522
        %v1593 = vunpack.c.l.b16 %v1523
        %v1594 = vpack.c.b16 %v1591, %v1590
        %v1595 = vpack.c.b16 %v1593, %v1592
        %v1599 = vsel %vm789, %v1519, 0
        %1601 = vmatprep.subr.bf16.mxu0 0
        %1602 = vmatpush1.bf16.msra.mxu0 0
        %1603 = vmatprep.subr.bf16.mxu0 0
        %1604 = vmatpush1.bf16.msra.mxu0 0
        %1605 = vmatprep.subr.bf16.mxu0 0
        %1606 = vmatpush1.bf16.msra.mxu0 0
        %1607 = vmatprep.subr.bf16.mxu0 0
        %1608 = vmatpush1.bf16.msra.mxu0 0
        %1609 = vmatprep.subr.bf16.mxu0 0
        %1610 = vmatpush1.bf16.msra.mxu0 0
        %1611 = vmatprep.subr.bf16.mxu0 0
        %1612 = vmatpush1.bf16.msra.mxu0 0
        %1613 = vmatprep.subr.bf16.mxu0 0
        %1614 = vmatpush1.bf16.msra.mxu0 %v1595
        %1615 = vmatprep.subr.bf16.mxu0 0
        %1616 = vmatpush1.bf16.msra.mxu0 %v1594
        %1617 = vmatprep.subr.bf16.mxu0 0
        %1618 = vmatpush2.bf16.msra.mxu0 0
        %1619 = vmatprep.subr.bf16.mxu0 0
        %1620 = vmatpush2.bf16.msra.mxu0 0
        %1621 = vmatprep.subr.bf16.mxu0 0
        %1622 = vmatpush2.bf16.msra.mxu0 0
        %1623 = vmatprep.subr.bf16.mxu0 0
        %1624 = vmatpush2.bf16.msra.mxu0 0
        %1625 = vmatprep.subr.bf16.mxu0 0
        %1626 = vmatpush2.bf16.msra.mxu0 0
        %1627 = vmatprep.subr.bf16.mxu0 0
        %1628 = vmatpush2.bf16.msra.mxu0 0
        %1629 = vmatprep.subr.bf16.mxu0 0
        %1630 = vmatpush2.bf16.msra.mxu0 0
        %1631 = vmatprep.subr.bf16.mxu0 0
        %1632 = vmatpush2.bf16.msra.mxu0 0
        %1633 = vmatprep.mubr.bf16.mxu0 0
        %1634 = vmatmul.mubr.bf16.gmra.mxu0 %v1599
        %v1635 = vpop.f32.mrf.mxu0
        %v1636 = vadd.f32 %v1580, %v1635
        %v1637 = vpop.f32.mrf.mxu0
        %v1638 = vpop.f32.mrf.mxu0
        %v1639 = vadd.f32 %v1583, %v1638
        %v1640 = vpop.f32.mrf.mxu0
        %1641 = vdwg.mxu0
        %v1642 = vrot.slane %v1511, 1
        %v1643 = vrot.slane %v1512, 1
        %v1644 = vsel %vm892, %v1642, %v1643
        %v1645 = vsel %vm892, %v1643, %v1642
        %v1646 = vsel %vm899, %v1644, 0.0
        %v1647 = vsel %vm900, %v1645, 0.0
        %v1648 = vpack.c.bf16 %v1647, %v1646
        %s1649 = scalar_lea.vmem [#allocation13], 32
        %v1650 = vld [vmem:[%s1649] sm:$0xf]
        %v1651 = vld [vmem:[%s1649 + $0x4] sm:$0xf]
        %v1652 = vld [vmem:[%s1649 + $0x8] sm:$0xf]
        %v1653 = vld [vmem:[%s1649 + $0xc] sm:$0xf]
        %v1658 = vunpack.c.l.b16 %v1650
        %v1659 = vunpack.c.l.b16 %v1651
        %v1660 = vunpack.c.l.b16 %v1652
        %v1661 = vunpack.c.l.b16 %v1653
        %v1662 = vpack.c.b16 %v1659, %v1658
        %v1663 = vpack.c.b16 %v1661, %v1660
        %v1667 = vsel %vm789, %v1648, 0
        %1669 = vmatprep.subr.bf16.mxu0 0
        %1670 = vmatpush1.bf16.msra.mxu0 0
        %1671 = vmatprep.subr.bf16.mxu0 0
        %1672 = vmatpush1.bf16.msra.mxu0 0
        %1673 = vmatprep.subr.bf16.mxu0 0
        %1674 = vmatpush1.bf16.msra.mxu0 0
        %1675 = vmatprep.subr.bf16.mxu0 0
        %1676 = vmatpush1.bf16.msra.mxu0 0
        %1677 = vmatprep.subr.bf16.mxu0 0
        %1678 = vmatpush1.bf16.msra.mxu0 0
        %1679 = vmatprep.subr.bf16.mxu0 0
        %1680 = vmatpush1.bf16.msra.mxu0 0
        %1681 = vmatprep.subr.bf16.mxu0 0
        %1682 = vmatpush1.bf16.msra.mxu0 %v1663
        %1683 = vmatprep.subr.bf16.mxu0 0
        %1684 = vmatpush1.bf16.msra.mxu0 %v1662
        %1685 = vmatprep.subr.bf16.mxu0 0
        %1686 = vmatpush2.bf16.msra.mxu0 0
        %1687 = vmatprep.subr.bf16.mxu0 0
        %1688 = vmatpush2.bf16.msra.mxu0 0
        %1689 = vmatprep.subr.bf16.mxu0 0
        %1690 = vmatpush2.bf16.msra.mxu0 0
        %1691 = vmatprep.subr.bf16.mxu0 0
        %1692 = vmatpush2.bf16.msra.mxu0 0
        %1693 = vmatprep.subr.bf16.mxu0 0
        %1694 = vmatpush2.bf16.msra.mxu0 0
        %1695 = vmatprep.subr.bf16.mxu0 0
        %1696 = vmatpush2.bf16.msra.mxu0 0
        %1697 = vmatprep.subr.bf16.mxu0 0
        %1698 = vmatpush2.bf16.msra.mxu0 0
        %1699 = vmatprep.subr.bf16.mxu0 0
        %1700 = vmatpush2.bf16.msra.mxu0 0
        %1701 = vmatprep.mubr.bf16.mxu0 0
        %1702 = vmatmul.mubr.bf16.gmra.mxu0 %v1667
        %v1703 = vpop.f32.mrf.mxu0
        %v1704 = vadd.f32 0.0, %v1703
        %v1705 = vpop.f32.mrf.mxu0
        %v1706 = vpop.f32.mrf.mxu0
        %v1707 = vadd.f32 0.0, %v1706
        %v1708 = vpop.f32.mrf.mxu0
        %1709 = vdwg.mxu0
        %v1710 = vadd.f32 %v1636, %v1704
        %v1711 = vadd.f32 %v1639, %v1707
        %v1712 = vld [vmem:[#allocation14] sm:$0x1]
        %v1714 = vlaneseq
        %v1715 = vshrl.u32 %v1714, 7
        %v1716 = vsub.s32 0, %v1715
        %v1717 = vrot.slane %v1712, %v1716
        %v1719 = vadd.f32 %v1710, %v1717
        %v1720 = vadd.f32 %v1711, %v1717
        %v1721 = vld [vmem:[#allocation16] sm:$0xf]
        %v1722 = vld [vmem:[#allocation16 + $0x4] sm:$0xf]
        %v1723 = vld [vmem:[#allocation16 + $0x8] sm:$0xf]
        %v1724 = vld [vmem:[#allocation16 + $0xc] sm:$0xf]
        %v1725 = vld [vmem:[#allocation16 + $0x10] sm:$0xf]
        %v1726 = vld [vmem:[#allocation16 + $0x14] sm:$0xf]
        %v1727 = vld [vmem:[#allocation17] sm:$0x1]
        %v1729 = vlaneseq
        %v1730 = vshrl.u32 %v1729, 7
        %v1731 = vsub.s32 0, %v1730
        %v1732 = vrot.slane %v1727, %v1731
        %v1740 = vunpack.c.l.b16 %v1721
        %v1741 = vunpack.c.l.b16 %v1722
        %v1742 = vunpack.c.l.b16 %v1723
        %v1743 = vunpack.c.l.b16 %v1724
        %v1744 = vunpack.c.l.b16 %v1725
        %v1745 = vunpack.c.l.b16 %v1726
        %v1746 = vpack.c.b16 %v1741, %v1740
        %v1747 = vpack.c.b16 %v1743, %v1742
        %v1748 = vpack.c.b16 %v1745, %v1744
        %1752 = vmatprep.subr.bf16.mxu0 0
        %1753 = vmatpush1.bf16.msra.mxu0 0
        %1754 = vmatprep.subr.bf16.mxu0 0
        %1755 = vmatpush1.bf16.msra.mxu0 0
        %1756 = vmatprep.subr.bf16.mxu0 0
        %1757 = vmatpush1.bf16.msra.mxu0 0
        %1758 = vmatprep.subr.bf16.mxu0 0
        %1759 = vmatpush1.bf16.msra.mxu0 0
        %1760 = vmatprep.subr.bf16.mxu0 0
        %1761 = vmatpush1.bf16.msra.mxu0 0
        %1762 = vmatprep.subr.bf16.mxu0 0
        %1763 = vmatpush1.bf16.msra.mxu0 %v1748
        %1764 = vmatprep.subr.bf16.mxu0 0
        %1765 = vmatpush1.bf16.msra.mxu0 %v1747
        %1766 = vmatprep.subr.bf16.mxu0 0
        %1767 = vmatpush1.bf16.msra.mxu0 %v1746
        %1768 = vmatprep.subr.bf16.mxu0 0
        %1769 = vmatpush2.bf16.msra.mxu0 0
        %1770 = vmatprep.subr.bf16.mxu0 0
        %1771 = vmatpush2.bf16.msra.mxu0 0
        %1772 = vmatprep.subr.bf16.mxu0 0
        %1773 = vmatpush2.bf16.msra.mxu0 0
        %1774 = vmatprep.subr.bf16.mxu0 0
        %1775 = vmatpush2.bf16.msra.mxu0 0
        %1776 = vmatprep.subr.bf16.mxu0 0
        %1777 = vmatpush2.bf16.msra.mxu0 0
        %1778 = vmatprep.subr.bf16.mxu0 0
        %1779 = vmatpush2.bf16.msra.mxu0 0
        %1780 = vmatprep.subr.bf16.mxu0 0
        %1781 = vmatpush2.bf16.msra.mxu0 0
        %1782 = vmatprep.subr.bf16.mxu0 0
        %1783 = vmatpush2.bf16.msra.mxu0 0
        %1784 = vmatprep.mubr.bf16.mxu0 0
        %1785 = vmatmul.mubr.bf16.gmra.mxu0 %v1319
        %v1786 = vpop.f32.mrf.mxu0
        %v1787 = vadd.f32 %v1732, %v1786
        %v1788 = vpop.f32.mrf.mxu0
        %v1789 = vpop.f32.mrf.mxu0
        %v1790 = vadd.f32 %v1732, %v1789
        %v1791 = vpop.f32.mrf.mxu0
        %1792 = vdwg.mxu0
        %v1793 = vadd.f32 %v1719, %v1787
        %v1794 = vadd.f32 %v1720, %v1790
        %v1795 = vtanh.pop %v1793
        %v1796 = vtanh.pop %v1794
        %v1797 = vpack.c.bf16 %v1796, %v1795
        %v1798 = vld [vmem:[#allocation19] sm:$0xf]
        %v1799 = vld [vmem:[#allocation19 + $0x4] sm:$0xf]
        %v1800 = vld [vmem:[#allocation19 + $0x8] sm:$0xf]
        %v1801 = vld [vmem:[#allocation19 + $0xc] sm:$0xf]
        %v1802 = vld [vmem:[#allocation19 + $0x10] sm:$0xf]
        %v1803 = vld [vmem:[#allocation19 + $0x14] sm:$0xf]
        %v1804 = vld [vmem:[#allocation19 + $0x18] sm:$0xf]
        %v1805 = vld [vmem:[#allocation19 + $0x1c] sm:$0xf]
        %v1806 = vld [vmem:[#allocation19 + $0x20] sm:$0xf]
        %v1807 = vld [vmem:[#allocation19 + $0x24] sm:$0xf]
        %v1808 = vld [vmem:[#allocation19 + $0x28] sm:$0xf]
        %v1809 = vld [vmem:[#allocation19 + $0x2c] sm:$0xf]
        %v1810 = vld [vmem:[#allocation19 + $0x30] sm:$0xf]
        %v1811 = vld [vmem:[#allocation19 + $0x34] sm:$0xf]
        %v1812 = vld [vmem:[#allocation19 + $0x38] sm:$0xf]
        %v1813 = vld [vmem:[#allocation19 + $0x3c] sm:$0xf]
        %v1830 = vunpack.c.l.b16 %v1798
        %v1831 = vunpack.c.l.b16 %v1799
        %v1832 = vunpack.c.l.b16 %v1800
        %v1833 = vunpack.c.l.b16 %v1801
        %v1834 = vunpack.c.l.b16 %v1802
        %v1835 = vunpack.c.l.b16 %v1803
        %v1836 = vunpack.c.l.b16 %v1804
        %v1837 = vunpack.c.l.b16 %v1805
        %v1838 = vunpack.c.l.b16 %v1806
        %v1839 = vunpack.c.l.b16 %v1807
        %v1840 = vunpack.c.l.b16 %v1808
        %v1841 = vunpack.c.l.b16 %v1809
        %v1842 = vunpack.c.l.b16 %v1810
        %v1843 = vunpack.c.l.b16 %v1811
        %v1844 = vunpack.c.l.b16 %v1812
        %v1845 = vunpack.c.l.b16 %v1813
        %v1846 = vpack.c.b16 %v1831, %v1830
        %v1847 = vpack.c.b16 %v1833, %v1832
        %v1848 = vpack.c.b16 %v1835, %v1834
        %v1849 = vpack.c.b16 %v1837, %v1836
        %v1850 = vpack.c.b16 %v1839, %v1838
        %v1851 = vpack.c.b16 %v1841, %v1840
        %v1852 = vpack.c.b16 %v1843, %v1842
        %v1853 = vpack.c.b16 %v1845, %v1844
        %1862 = vmatprep.subr.bf16.mxu0 0
        %1863 = vmatpush1.bf16.msra.mxu0 %v1853
        %1864 = vmatprep.subr.bf16.mxu0 0
        %1865 = vmatpush1.bf16.msra.mxu0 %v1852
        %1866 = vmatprep.subr.bf16.mxu0 0
        %1867 = vmatpush1.bf16.msra.mxu0 %v1851
        %1868 = vmatprep.subr.bf16.mxu0 0
        %1869 = vmatpush1.bf16.msra.mxu0 %v1850
        %1870 = vmatprep.subr.bf16.mxu0 0
        %1871 = vmatpush1.bf16.msra.mxu0 %v1849
        %1872 = vmatprep.subr.bf16.mxu0 0
        %1873 = vmatpush1.bf16.msra.mxu0 %v1848
        %1874 = vmatprep.subr.bf16.mxu0 0
        %1875 = vmatpush1.bf16.msra.mxu0 %v1847
        %1876 = vmatprep.subr.bf16.mxu0 0
        %1877 = vmatpush1.bf16.msra.mxu0 %v1846
        %1878 = vmatprep.subr.bf16.mxu0 0
        %1879 = vmatpush2.bf16.msra.mxu0 0
        %1880 = vmatprep.subr.bf16.mxu0 0
        %1881 = vmatpush2.bf16.msra.mxu0 0
        %1882 = vmatprep.subr.bf16.mxu0 0
        %1883 = vmatpush2.bf16.msra.mxu0 0
        %1884 = vmatprep.subr.bf16.mxu0 0
        %1885 = vmatpush2.bf16.msra.mxu0 0
        %1886 = vmatprep.subr.bf16.mxu0 0
        %1887 = vmatpush2.bf16.msra.mxu0 0
        %1888 = vmatprep.subr.bf16.mxu0 0
        %1889 = vmatpush2.bf16.msra.mxu0 0
        %1890 = vmatprep.subr.bf16.mxu0 0
        %1891 = vmatpush2.bf16.msra.mxu0 0
        %1892 = vmatprep.subr.bf16.mxu0 0
        %1893 = vmatpush2.bf16.msra.mxu0 0
        %1894 = vmatprep.mubr.bf16.mxu0 0
        %1895 = vmatmul.mubr.bf16.gmra.mxu0 %v1797
        %v1896 = vpop.f32.mrf.mxu0
        %v1897 = vadd.f32 0.0, %v1896
        %v1898 = vpop.f32.mrf.mxu0
        %v1899 = vpop.f32.mrf.mxu0
        %v1900 = vadd.f32 0.0, %v1899
        %v1901 = vpop.f32.mrf.mxu0
        %1902 = vdwg.mxu0
        %v1903 = vmax.f32 %v1897, %v1900
        %v1904 = vrot.slane %v1903, 4
        %v1905 = vmax.f32 %v1903, %v1904
        %v1906 = vrot.slane %v1905, 2
        %v1907 = vmax.f32 %v1905, %v1906
        %v1908 = vrot.slane %v1907, 1
        %v1909 = vmax.f32 %v1907, %v1908
        %v1910 = vsub.f32 %v1897, %v1909
        %v1911 = vsub.f32 %v1900, %v1909
        %v1912 = vmul.f32 %v1910, 1.442695
        %v1913 = vpow.pop %v1912
        %v1914 = vmul.f32 %v1911, 1.442695
        %v1915 = vpow.pop %v1914
        %v1916 = vadd.f32 %v1913, %v1915
        %v1917 = vrot.slane %v1916, 4
        %v1918 = vadd.f32 %v1916, %v1917
        %v1919 = vrot.slane %v1918, 2
        %v1920 = vadd.f32 %v1918, %v1919
        %v1921 = vrot.slane %v1920, 1
        %v1922 = vadd.f32 %v1920, %v1921
        %v1923 = vrcp.pop %v1922
        %v1924 = vmul.f32 %v1913, %v1923
        %v1925 = vmul.f32 %v1915, %v1923
        %1926 = vst [vmem:[%s728] sm:$0xff] %v1924
        %1927 = vst [vmem:[%s728 + $0x8] sm:$0xff] %v1925
        %1928 = vxpose.xlu0.b32.start [1/16] %v1924, 128
        %1929 = vxpose.xlu0.b32.cont [2/16] %v1925, 128
        %1930 = vxpose.xlu0.b32.cont [3/16] 0.0, 128
        %1931 = vxpose.xlu0.b32.cont [4/16] 0.0, 128
        %1932 = vxpose.xlu0.b32.cont [5/16] 0.0, 128
        %1933 = vxpose.xlu0.b32.cont [6/16] 0.0, 128
        %1934 = vxpose.xlu0.b32.cont [7/16] 0.0, 128
        %1935 = vxpose.xlu0.b32.cont [8/16] 0.0, 128
        %1936 = vxpose.xlu0.b32.cont [9/16] 0.0, 128
        %1937 = vxpose.xlu0.b32.cont [10/16] 0.0, 128
        %1938 = vxpose.xlu0.b32.cont [11/16] 0.0, 128
        %1939 = vxpose.xlu0.b32.cont [12/16] 0.0, 128
        %1940 = vxpose.xlu0.b32.cont [13/16] 0.0, 128
        %1941 = vxpose.xlu0.b32.cont [14/16] 0.0, 128
        %1942 = vxpose.xlu0.b32.cont [15/16] 0.0, 128
        %1943 = vxpose.xlu0.b32.end [16/16] 0.0, 128
        %v1944 = vpop.trf.xlu0
        %v1945 = vpop.trf.xlu0
        %v1946 = vpop.trf.xlu0
        %v1947 = vpop.trf.xlu0
        %v1948 = vpop.trf.xlu0
        %v1949 = vpop.trf.xlu0
        %v1950 = vpop.trf.xlu0
        %v1951 = vpop.trf.xlu0
        %v1952 = vpop.trf.xlu0
        %v1953 = vpop.trf.xlu0
        %v1954 = vpop.trf.xlu0
        %v1955 = vpop.trf.xlu0
        %v1956 = vpop.trf.xlu0
        %v1957 = vpop.trf.xlu0
        %v1958 = vpop.trf.xlu0
        %v1959 = vpop.trf.xlu0
        %vm1960 = vcmask 130048
        %v1962 = vsel %vm1960, %v1944, 0
        %v1965 = vsel %vm1960, %v1945, 0
        %v1968 = vsel %vm1960, %v1946, 0
        %v1971 = vsel %vm1960, %v1947, 0
        %v1974 = vsel %vm1960, %v1948, 0
        %v1977 = vsel %vm1960, %v1949, 0
        %v1980 = vsel %vm1960, %v1950, 0
        %v1983 = vsel %vm1960, %v1951, 0
        %v1986 = vsel %vm1960, %v1952, 0
        %v1989 = vsel %vm1960, %v1953, 0
        %v1992 = vsel %vm1960, %v1954, 0
        %v1995 = vsel %vm1960, %v1955, 0
        %v1998 = vsel %vm1960, %v1956, 0
        %v2001 = vsel %vm1960, %v1957, 0
        %v2004 = vsel %vm1960, %v1958, 0
        %v2007 = vsel %vm1960, %v1959, 0
        %2009 = vmatprep.subr.mxu0 0.0
        %2010 = vmatpush1.msra.mxu0 0.0
        %2011 = vmatprep.subr.mxu0 0.0
        %2012 = vmatpush1.msra.mxu0 0.0
        %2013 = vmatprep.subr.mxu0 0.0
        %2014 = vmatpush1.msra.mxu0 0.0
        %2015 = vmatprep.subr.mxu0 0.0
        %2016 = vmatpush1.msra.mxu0 0.0
        %2017 = vmatprep.subr.mxu0 0.0
        %2018 = vmatpush1.msra.mxu0 0.0
        %2019 = vmatprep.subr.mxu0 0.0
        %2020 = vmatpush1.msra.mxu0 0.0
        %2021 = vmatprep.subr.mxu0 0.0
        %2022 = vmatpush1.msra.mxu0 0.0
        %2023 = vmatprep.subr.mxu0 0.0
        %2024 = vmatpush1.msra.mxu0 0.0
        %2025 = vmatprep.subr.mxu0 0.0
        %2026 = vmatpush1.msra.mxu0 0.0
        %2027 = vmatprep.subr.mxu0 0.0
        %2028 = vmatpush1.msra.mxu0 0.0
        %2029 = vmatprep.subr.mxu0 0.0
        %2030 = vmatpush1.msra.mxu0 0.0
        %2031 = vmatprep.subr.mxu0 0.0
        %2032 = vmatpush1.msra.mxu0 0.0
        %2033 = vmatprep.subr.mxu0 0.0
        %2034 = vmatpush1.msra.mxu0 0.0
        %2035 = vmatprep.subr.mxu0 0.0
        %2036 = vmatpush1.msra.mxu0 0.0
        %2037 = vmatprep.subr.mxu0 0.0
        %2038 = vmatpush1.msra.mxu0 %v1796
        %2039 = vmatprep.subr.mxu0 0.0
        %2040 = vmatpush1.msra.mxu0 %v1795
        %2041 = vmatprep.subr.mxu0 0.0
        %2042 = vmatpush2.msra.mxu0 0.0
        %2043 = vmatprep.subr.mxu0 0.0
        %2044 = vmatpush2.msra.mxu0 0.0
        %2045 = vmatprep.subr.mxu0 0.0
        %2046 = vmatpush2.msra.mxu0 0.0
        %2047 = vmatprep.subr.mxu0 0.0
        %2048 = vmatpush2.msra.mxu0 0.0
        %2049 = vmatprep.subr.mxu0 0.0
        %2050 = vmatpush2.msra.mxu0 0.0
        %2051 = vmatprep.subr.mxu0 0.0
        %2052 = vmatpush2.msra.mxu0 0.0
        %2053 = vmatprep.subr.mxu0 0.0
        %2054 = vmatpush2.msra.mxu0 0.0
        %2055 = vmatprep.subr.mxu0 0.0
        %2056 = vmatpush2.msra.mxu0 0.0
        %2057 = vmatprep.subr.mxu0 0.0
        %2058 = vmatpush2.msra.mxu0 0.0
        %2059 = vmatprep.subr.mxu0 0.0
        %2060 = vmatpush2.msra.mxu0 0.0
        %2061 = vmatprep.subr.mxu0 0.0
        %2062 = vmatpush2.msra.mxu0 0.0
        %2063 = vmatprep.subr.mxu0 0.0
        %2064 = vmatpush2.msra.mxu0 0.0
        %2065 = vmatprep.subr.mxu0 0.0
        %2066 = vmatpush2.msra.mxu0 0.0
        %2067 = vmatprep.subr.mxu0 0.0
        %2068 = vmatpush2.msra.mxu0 0.0
        %2069 = vmatprep.subr.mxu0 0.0
        %2070 = vmatpush2.msra.mxu0 0.0
        %2071 = vmatprep.subr.mxu0 0.0
        %2072 = vmatpush2.msra.mxu0 0.0
        %2073 = vmatprep.mubr.f32.mxu0 0.0
        %2074 = vmatmul.mubr.f32.gmra.mxu0 %v1962
        %v2075 = vpop.f32.mrf.mxu0
        %v2076 = vadd.f32 0.0, %v2075
        %v2077 = vpop.f32.mrf.mxu0
        %2078 = vmatprep.mubr.f32.mxu0 0.0
        %2079 = vmatmul.mubr.f32.gmra.mxu0 %v1965
        %v2080 = vpop.f32.mrf.mxu0
        %v2081 = vadd.f32 0.0, %v2080
        %v2082 = vpop.f32.mrf.mxu0
        %2083 = vmatprep.mubr.f32.mxu0 0.0
        %2084 = vmatmul.mubr.f32.gmra.mxu0 %v1968
        %v2085 = vpop.f32.mrf.mxu0
        %v2086 = vadd.f32 0.0, %v2085
        %v2087 = vpop.f32.mrf.mxu0
        %2088 = vmatprep.mubr.f32.mxu0 0.0
        %2089 = vmatmul.mubr.f32.gmra.mxu0 %v1971
        %v2090 = vpop.f32.mrf.mxu0
        %v2091 = vadd.f32 0.0, %v2090
        %v2092 = vpop.f32.mrf.mxu0
        %2093 = vmatprep.mubr.f32.mxu0 0.0
        %2094 = vmatmul.mubr.f32.gmra.mxu0 %v1974
        %v2095 = vpop.f32.mrf.mxu0
        %v2096 = vadd.f32 0.0, %v2095
        %v2097 = vpop.f32.mrf.mxu0
        %2098 = vmatprep.mubr.f32.mxu0 0.0
        %2099 = vmatmul.mubr.f32.gmra.mxu0 %v1977
        %v2100 = vpop.f32.mrf.mxu0
        %v2101 = vadd.f32 0.0, %v2100
        %v2102 = vpop.f32.mrf.mxu0
        %2103 = vmatprep.mubr.f32.mxu0 0.0
        %2104 = vmatmul.mubr.f32.gmra.mxu0 %v1980
        %v2105 = vpop.f32.mrf.mxu0
        %v2106 = vadd.f32 0.0, %v2105
        %v2107 = vpop.f32.mrf.mxu0
        %2108 = vmatprep.mubr.f32.mxu0 0.0
        %2109 = vmatmul.mubr.f32.gmra.mxu0 %v1983
        %v2110 = vpop.f32.mrf.mxu0
        %v2111 = vadd.f32 0.0, %v2110
        %v2112 = vpop.f32.mrf.mxu0
        %2113 = vmatprep.mubr.f32.mxu0 0.0
        %2114 = vmatmul.mubr.f32.gmra.mxu0 %v1986
        %v2115 = vpop.f32.mrf.mxu0
        %v2116 = vadd.f32 0.0, %v2115
        %v2117 = vpop.f32.mrf.mxu0
        %2118 = vmatprep.mubr.f32.mxu0 0.0
        %2119 = vmatmul.mubr.f32.gmra.mxu0 %v1989
        %v2120 = vpop.f32.mrf.mxu0
        %v2121 = vadd.f32 0.0, %v2120
        %v2122 = vpop.f32.mrf.mxu0
        %2123 = vmatprep.mubr.f32.mxu0 0.0
        %2124 = vmatmul.mubr.f32.gmra.mxu0 %v1992
        %v2125 = vpop.f32.mrf.mxu0
        %v2126 = vadd.f32 0.0, %v2125
        %v2127 = vpop.f32.mrf.mxu0
        %2128 = vmatprep.mubr.f32.mxu0 0.0
        %2129 = vmatmul.mubr.f32.gmra.mxu0 %v1995
        %v2130 = vpop.f32.mrf.mxu0
        %v2131 = vadd.f32 0.0, %v2130
        %v2132 = vpop.f32.mrf.mxu0
        %2133 = vmatprep.mubr.f32.mxu0 0.0
        %2134 = vmatmul.mubr.f32.gmra.mxu0 %v1998
        %v2135 = vpop.f32.mrf.mxu0
        %v2136 = vadd.f32 0.0, %v2135
        %v2137 = vpop.f32.mrf.mxu0
        %2138 = vmatprep.mubr.f32.mxu0 0.0
        %2139 = vmatmul.mubr.f32.gmra.mxu0 %v2001
        %v2140 = vpop.f32.mrf.mxu0
        %v2141 = vadd.f32 0.0, %v2140
        %v2142 = vpop.f32.mrf.mxu0
        %2143 = vmatprep.mubr.f32.mxu0 0.0
        %2144 = vmatmul.mubr.f32.gmra.mxu0 %v2004
        %v2145 = vpop.f32.mrf.mxu0
        %v2146 = vadd.f32 0.0, %v2145
        %v2147 = vpop.f32.mrf.mxu0
        %2148 = vmatprep.mubr.f32.mxu0 0.0
        %2149 = vmatmul.mubr.f32.gmra.mxu0 %v2007
        %v2150 = vpop.f32.mrf.mxu0
        %v2151 = vadd.f32 0.0, %v2150
        %v2152 = vpop.f32.mrf.mxu0
        %2153 = vdwg.mxu0
        %2154 = vst [vmem:[%s735] sm:$0xff] %v2076
        %2155 = vst [vmem:[%s735 + $0x8] sm:$0xff] %v2081
        %2156 = vst [vmem:[%s735 + $0x10] sm:$0xff] %v2086
        %2157 = vst [vmem:[%s735 + $0x18] sm:$0xff] %v2091
        %2158 = vst [vmem:[%s735 + $0x20] sm:$0xff] %v2096
        %2159 = vst [vmem:[%s735 + $0x28] sm:$0xff] %v2101
        %2160 = vst [vmem:[%s735 + $0x30] sm:$0xff] %v2106
        %2161 = vst [vmem:[%s735 + $0x38] sm:$0xff] %v2111
        %2162 = vst [vmem:[%s735 + $0x40] sm:$0xff] %v2116
        %2163 = vst [vmem:[%s735 + $0x48] sm:$0xff] %v2121
        %2164 = vst [vmem:[%s735 + $0x50] sm:$0xff] %v2126
        %2165 = vst [vmem:[%s735 + $0x58] sm:$0xff] %v2131
        %2166 = vst [vmem:[%s735 + $0x60] sm:$0xff] %v2136
        %2167 = vst [vmem:[%s735 + $0x68] sm:$0xff] %v2141
        %2168 = vst [vmem:[%s735 + $0x70] sm:$0xff] %v2146
        %2169 = vst [vmem:[%s735 + $0x78] sm:$0xff] %v2151
        %v2170 = vld [vmem:[%s14] sm:$0xff]
        %v2171 = vld [vmem:[%s14 + $0x8] sm:$0xff]
        %v2172 = vld [vmem:[%s14 + $0x10] sm:$0xff]
        %v2173 = vld [vmem:[%s14 + $0x18] sm:$0xff]
        %v2174 = vld [vmem:[%s14 + $0x20] sm:$0xff]
        %v2175 = vld [vmem:[%s14 + $0x28] sm:$0xff]
        %v2176 = vld [vmem:[%s14 + $0x30] sm:$0xff]
        %v2177 = vld [vmem:[%s14 + $0x38] sm:$0xff]
        %v2178 = vld [vmem:[%s14 + $0x40] sm:$0xff]
        %v2179 = vld [vmem:[%s14 + $0x48] sm:$0xff]
        %v2180 = vld [vmem:[%s14 + $0x50] sm:$0xff]
        %v2181 = vld [vmem:[%s14 + $0x58] sm:$0xff]
        %v2182 = vld [vmem:[%s14 + $0x60] sm:$0xff]
        %v2183 = vld [vmem:[%s14 + $0x68] sm:$0xff]
        %v2184 = vld [vmem:[%s14 + $0x70] sm:$0xff]
        %v2185 = vld [vmem:[%s14 + $0x78] sm:$0xff]
        %2186 = vmatprep.subr.mxu0 0.0
        %2187 = vmatpush1.msra.mxu0 %v2185
        %2188 = vmatprep.subr.mxu0 0.0
        %2189 = vmatpush1.msra.mxu0 %v2184
        %2190 = vmatprep.subr.mxu0 0.0
        %2191 = vmatpush1.msra.mxu0 %v2183
        %2192 = vmatprep.subr.mxu0 0.0
        %2193 = vmatpush1.msra.mxu0 %v2182
        %2194 = vmatprep.subr.mxu0 0.0
        %2195 = vmatpush1.msra.mxu0 %v2181
        %2196 = vmatprep.subr.mxu0 0.0
        %2197 = vmatpush1.msra.mxu0 %v2180
        %2198 = vmatprep.subr.mxu0 0.0
        %2199 = vmatpush1.msra.mxu0 %v2179
        %2200 = vmatprep.subr.mxu0 0.0
        %2201 = vmatpush1.msra.mxu0 %v2178
        %2202 = vmatprep.subr.mxu0 0.0
        %2203 = vmatpush1.msra.mxu0 %v2177
        %2204 = vmatprep.subr.mxu0 0.0
        %2205 = vmatpush1.msra.mxu0 %v2176
        %2206 = vmatprep.subr.mxu0 0.0
        %2207 = vmatpush1.msra.mxu0 %v2175
        %2208 = vmatprep.subr.mxu0 0.0
        %2209 = vmatpush1.msra.mxu0 %v2174
        %2210 = vmatprep.subr.mxu0 0.0
        %2211 = vmatpush1.msra.mxu0 %v2173
        %2212 = vmatprep.subr.mxu0 0.0
        %2213 = vmatpush1.msra.mxu0 %v2172
        %2214 = vmatprep.subr.mxu0 0.0
        %2215 = vmatpush1.msra.mxu0 %v2171
        %2216 = vmatprep.subr.mxu0 0.0
        %2217 = vmatpush1.msra.mxu0 %v2170
        %2218 = vmatprep.subr.mxu0 0.0
        %2219 = vmatpush2.msra.mxu0 0.0
        %2220 = vmatprep.subr.mxu0 0.0
        %2221 = vmatpush2.msra.mxu0 0.0
        %2222 = vmatprep.subr.mxu0 0.0
        %2223 = vmatpush2.msra.mxu0 0.0
        %2224 = vmatprep.subr.mxu0 0.0
        %2225 = vmatpush2.msra.mxu0 0.0
        %2226 = vmatprep.subr.mxu0 0.0
        %2227 = vmatpush2.msra.mxu0 0.0
        %2228 = vmatprep.subr.mxu0 0.0
        %2229 = vmatpush2.msra.mxu0 0.0
        %2230 = vmatprep.subr.mxu0 0.0
        %2231 = vmatpush2.msra.mxu0 0.0
        %2232 = vmatprep.subr.mxu0 0.0
        %2233 = vmatpush2.msra.mxu0 0.0
        %2234 = vmatprep.subr.mxu0 0.0
        %2235 = vmatpush2.msra.mxu0 0.0
        %2236 = vmatprep.subr.mxu0 0.0
        %2237 = vmatpush2.msra.mxu0 0.0
        %2238 = vmatprep.subr.mxu0 0.0
        %2239 = vmatpush2.msra.mxu0 0.0
        %2240 = vmatprep.subr.mxu0 0.0
        %2241 = vmatpush2.msra.mxu0 0.0
        %2242 = vmatprep.subr.mxu0 0.0
        %2243 = vmatpush2.msra.mxu0 0.0
        %2244 = vmatprep.subr.mxu0 0.0
        %2245 = vmatpush2.msra.mxu0 0.0
        %2246 = vmatprep.subr.mxu0 0.0
        %2247 = vmatpush2.msra.mxu0 0.0
        %2248 = vmatprep.subr.mxu0 0.0
        %2249 = vmatpush2.msra.mxu0 0.0
        %2250 = vmatprep.mubr.f32.mxu0 0.0
        %2251 = vmatmul.mubr.f32.gmra.mxu0 %v1795
        %v2252 = vpop.f32.mrf.mxu0
        %v2253 = vadd.f32 0.0, %v2252
        %v2254 = vpop.f32.mrf.mxu0
        %2255 = vmatprep.mubr.f32.mxu0 0.0
        %2256 = vmatmul.mubr.f32.gmra.mxu0 %v1796
        %v2257 = vpop.f32.mrf.mxu0
        %v2258 = vadd.f32 0.0, %v2257
        %v2259 = vpop.f32.mrf.mxu0
        %2260 = vdwg.mxu0
        %v2261 = vmul.f32 %v1924, %v2253
        %v2262 = vmul.f32 %v1925, %v2258
        %v2263 = vadd.f32 %v2261, %v2262
        %v2264 = vrot.slane %v2263, 4
        %v2265 = vadd.f32 %v2263, %v2264
        %v2266 = vrot.slane %v2265, 2
        %v2267 = vadd.f32 %v2265, %v2266
        %v2268 = vrot.slane %v2267, 1
        %v2269 = vadd.f32 %v2267, %v2268
        %v2270 = vld [vmem:[%s15] sm:$0x1]
        %v2271 = vadd.f32 %v2269, %v2270
        %2272 = vst [vmem:[%s721] sm:$0x1] %v2271
        %s2273 = sand.u32 %s391, 1
        %s2274 = scalar_lea.sflag [#allocation4], %s2273
        %s2275 = sand.u32 %s391, 1
        %s2276 = scalar_lea.vmem [#allocation20], %s2275
        %s2277 = sand.u32 %s42, 1
        %s2278 = scalar_lea.sflag [#allocation22], %s2277
        %s2279 = sand.u32 %s417, 1
        %s2280 = smul.addr %s2279, 16
        %s2281 = scalar_lea.vmem [#allocation21], %s2280
        %s2282 = sand.u32 %s42, 1
        %s2283 = scalar_lea.sflag [#allocation22], %s2282
        %s2284 = sand.u32 %s443, 1
        %s2285 = smul.addr %s2284, 128
        %s2286 = scalar_lea.vmem [#allocation23], %s2285
        // Predicated region
        $region129: #{tpu_custom_call.1} parent=83 // pred_check
          %p2287 = pneg %p401
        $region130: #{tpu_custom_call.1} parent=83 // pred_check_branch
          %2289 = sbr.rel (%p2287) target = $region132
        $region131: #{tpu_custom_call.1} parent=83 // pred_region
          %s2291 = ssub.s32 16, 16
          %2292 = vsyncadd %s2274, %s2291
          %s2293 = smul.addr %s42, 16
          %s2294 = scalar_lea.hbm %s16, %s2293
          %s2296 = sshll.u32 %s2276, 4
          %s2297 = int_to_ptr.vmem [resolvable:$true] %s2296
          %2299 = dma.vmem_to_hbm [thread:$0]  %s2297, 16, %s2294, %s2274
        $region132: #{tpu_custom_call.1} parent=83 // pred_fallthru
          _
        // Predicated region
        $region133: #{tpu_custom_call.1} parent=83 // pred_check
          %p2300 = pneg %p427
        $region134: #{tpu_custom_call.1} parent=83 // pred_check_branch
          %2302 = sbr.rel (%p2300) target = $region136
        $region135: #{tpu_custom_call.1} parent=83 // pred_region
          %s2304 = ssub.s32 256, 256
          %2305 = vsyncadd %s2278, %s2304
          %s2306 = smul.addr %s42, 2
          %s2307 = smul.addr %s2306, 128
          %s2308 = scalar_lea.hbm %s17, %s2307
          %s2309 = sshll.u32 %s2281, 4
          %s2310 = int_to_ptr.vmem [resolvable:$true] %s2309
          %2315 = dma.vmem_to_hbm [thread:$0]  %s2310, 256, %s2308, %s2278, 128, 128, 8
        $region136: #{tpu_custom_call.1} parent=83 // pred_fallthru
          _
        // Predicated region
        $region137: #{tpu_custom_call.1} parent=83 // pred_check
          %p2316 = pneg %p453
        $region138: #{tpu_custom_call.1} parent=83 // pred_check_branch
          %2318 = sbr.rel (%p2316) target = $region140
        $region139: #{tpu_custom_call.1} parent=83 // pred_region
          %s2320 = ssub.s32 2048, 2048
          %2321 = vsyncadd %s2283, %s2320
          %s2322 = smul.addr %s42, 16
          %s2323 = smul.addr %s2322, 128
          %s2324 = scalar_lea.hbm %s18, %s2323
          %s2325 = sshll.u32 %s2286, 4
          %s2326 = int_to_ptr.vmem [resolvable:$true] %s2325
          %2331 = dma.vmem_to_hbm [thread:$0]  %s2326, 2048, %s2324, %s2283, 128, 128, 8
        $region140: #{tpu_custom_call.1} parent=83 // pred_fallthru
          _
      $region84: #{tpu_custom_call.1} parent=5 // pred_fallthru
        _
      %p2332 = scmp.le.s32.totalorder 2, %s37
      // Predicated region
      $region141: #{tpu_custom_call.1} parent=5 // pred_check
        %p2333 = pneg %p2332
      $region142: #{tpu_custom_call.1} parent=5 // pred_check_branch
        %2335 = sbr.rel (%p2333) target = $region144
      $region143: #{tpu_custom_call.1} parent=5 // pred_region
        %s2336 = ssub.s32 %s37, 2
        // Predicated region
        $region145: #{tpu_custom_call.1} parent=143 // pred_check
          %p2337 = pneg %p407
        $region146: #{tpu_custom_call.1} parent=143 // pred_check_branch
          %2339 = sbr.rel (%p2337) target = $region148
        $region147: #{tpu_custom_call.1} parent=143 // pred_region
          %s2340 = sand.u32 %s392, 1
          %s2341 = scalar_lea.sflag [#allocation4], %s2340
          %s2342 = sand.u32 %s392, 1
          %s2343 = scalar_lea.vmem [#allocation20], %s2342
          %2344 = dma.done %s2341, 16
        $region148: #{tpu_custom_call.1} parent=143 // pred_fallthru
          _
        // Predicated region
        $region149: #{tpu_custom_call.1} parent=143 // pred_check
          %p2345 = pneg %p433
        $region150: #{tpu_custom_call.1} parent=143 // pred_check_branch
          %2347 = sbr.rel (%p2345) target = $region152
        $region151: #{tpu_custom_call.1} parent=143 // pred_region
          %s2348 = sand.u32 %s43, 1
          %s2349 = scalar_lea.sflag [#allocation22], %s2348
          %s2350 = sand.u32 %s418, 1
          %s2351 = smul.addr %s2350, 16
          %s2352 = scalar_lea.vmem [#allocation21], %s2351
          %2353 = dma.done %s2349, 256
        $region152: #{tpu_custom_call.1} parent=143 // pred_fallthru
          _
        // Predicated region
        $region153: #{tpu_custom_call.1} parent=143 // pred_check
          %p2354 = pneg %p459
        $region154: #{tpu_custom_call.1} parent=143 // pred_check_branch
          %2356 = sbr.rel (%p2354) target = $region156
        $region155: #{tpu_custom_call.1} parent=143 // pred_region
          %s2357 = sand.u32 %s43, 1
          %s2358 = scalar_lea.sflag [#allocation22], %s2357
          %s2359 = sand.u32 %s444, 1
          %s2360 = smul.addr %s2359, 128
          %s2361 = scalar_lea.vmem [#allocation23], %s2360
          %2362 = dma.done %s2358, 2048
        $region156: #{tpu_custom_call.1} parent=143 // pred_fallthru
          _
      $region144: #{tpu_custom_call.1} parent=5 // pred_fallthru
        _
    $region6: #{tpu_custom_call.1} parent=1 // loop_footer
      %s41 = sadd.s32 1, %s37
    $region7: #{tpu_custom_call.1} parent=1 // loop_footer_branch
      %36 = sbr.rel target = $region3
    $region8: #{tpu_custom_call.1} parent=1 // loop_exit
      _
    %2363 = vsyncpa [#allocation3], 1
    %s2364 = scalar_lea.sflag [#allocation3], 1
    %2365 = vsyncpa %s2364, 1
    %2366 = vsyncpa [#allocation6], 1
    %2367 = vsyncpa [#allocation9], 1
    %2368 = vsyncpa [#allocation12], 1
    %2369 = vsyncpa [#allocation15], 1
    %2370 = vsyncpa [#allocation18], 1
    %2371 = vsyncpa [#allocation4], 1
    %s2372 = scalar_lea.sflag [#allocation4], 1
    %2373 = vsyncpa %s2372, 1
    %2374 = vsyncpa [#allocation22], 1
    %s2375 = scalar_lea.sflag [#allocation22], 1
    %2376 = vsyncpa %s2375, 1

</llo_original>
